<compile_context>
chip_gen: v6e
topology: v6e:2x2x1
jax: 0.10.0
libtpu: 0.0.40
codegen_flags: <defaults>
</compile_context>

<pallas_src>
import jax
import jax.numpy as jnp
from jax import lax
from jax.experimental import pallas as pl
from jax.experimental.pallas import tpu as pltpu


# ----------------------------------------------------------------------------
# Hyper-parameters (Argument)
# ----------------------------------------------------------------------------
DIM = 8                 # Argument.initial_dim (per-head output dim)
HEADS = 2               # Argument.attention_head_num
LAYERS = 2              # Argument.number_of_layers
HIDDEN = DIM * HEADS    # 16
F_IN = 16               # raw node feature dim (preprocess input)
CLINICAL = 2            # clinical_concat = [age, stage]
RESIDUAL = "Y"          # Argument.residual_connection
LN_EPS = 1e-5
LEAKY_SLOPE = 0.2


# ----------------------------------------------------------------------------
# Fused forward kernel (everything VMEM-resident, all matmuls in f32)
# ----------------------------------------------------------------------------
def _fused_forward_kernel(x_ref, adj_ref, pool_ref, clin_ref,
                          w_pre_ref, b_pre_ref,
                          w_sd_ref, a_src_ref, a_dst_ref, lvec_ref,
                          w_post1_ref, b_post1_ref,
                          w_post2_ref, b_post2_ref,
                          w_risk_ref, o_ref):
    f32 = jnp.float32

    adj = adj_ref[...]                       # [N, N] f32 {0,1}; adj[i,j]=1: edge j->i
    neg = (adj - 1.0) * 1e9                  # additive mask: 0 on edges, -1e9 off-edges
    pool = pool_ref[...]                     # [B, N] f32 mean-pool matrix

    # ---- preprocess: Linear + ReLU (approximation, see TODO above) --------
    x = x_ref[...]                           # [N, F_IN] f32
    x_out = jnp.maximum(
        jnp.dot(x, w_pre_ref[...], preferred_element_type=f32) + b_pre_ref[...],
        0.0)                                 # [N, HIDDEN]

    pooled_feats = [x_out]                   # later: one fused pool matmul

    # ---- GAT_module stack (eval mode: no node/edge dropout, no dropedge) --
    for l in range(LAYERS):
        lv = lvec_ref[l]                     # [4, HIDDEN]: bias, ln_g, ln_b, prelu

        # fused src/dst linear projection: one wide MXU pass -> [N, 2*HIDDEN]
        h = jnp.dot(x_out, w_sd_ref[l], preferred_element_type=f32)
        h_src = h[:, :HIDDEN]                # [N, HIDDEN]
        h_dst = h[:, HIDDEN:]                # [N, HIDDEN]

        # per-head attention logits for ALL heads in two small matmuls
        # (a_src / a_dst are packed so row h only touches cols h*DIM:(h+1)*DIM)
        alpha_src = lax.dot_general(a_src_ref[l], h_src,
                                    (((1,), (1,)), ((), ())),
                                    preferred_element_type=f32)   # [HEADS, N]
        alpha_dst = lax.dot_general(a_dst_ref[l], h_dst,
                                    (((1,), (1,)), ((), ())),
                                    preferred_element_type=f32)   # [HEADS, N]

        # batched-head softmax over source nodes: e[h, i, j] (dst i, src j)
        e = alpha_dst[:, :, None] + alpha_src[:, None, :]          # [HEADS, N, N]
        e = jnp.maximum(e, LEAKY_SLOPE * e) + neg[None, :, :]      # LeakyReLU + mask
        m = jnp.max(e, axis=-1, keepdims=True)                     # finite: self-loops
        p = jnp.exp(e - m)                                         # masked -> exact 0
        denom = jnp.sum(p, axis=-1, keepdims=True)                 # >= 1 (self-loop)
        attn = p * pl.reciprocal(denom, approx=True)               # [HEADS, N, N]

        # per-head neighborhood aggregation, concatenated along features
        outs = [jnp.dot(attn[hh], h_src[:, hh * DIM:(hh + 1) * DIM],
                        preferred_element_type=f32)
                for hh in range(HEADS)]                            # HEADS x [N, DIM]
        x_before = jnp.concatenate(outs, axis=-1) + lv[0:1, :]     # + GATConv bias

        # per-node LayerNorm (== the reference per-graph nn.LayerNorm loop,
        # which normalizes over the feature dim of every node) + PReLU
        mu = jnp.mean(x_before, axis=-1, keepdims=True)
        var = jnp.mean((x_before - mu) ** 2, axis=-1, keepdims=True)
        y = (x_before - mu) * lax.rsqrt(var + LN_EPS) * lv[1:2, :] + lv[2:3, :]
        x_temp = jnp.where(y > 0, y, lv[3:4, :] * y)

        pooled_feats.append(x_temp)
        x_out = x_temp + x_out if RESIDUAL == "Y" else x_temp      # residual

    # ---- single fused global-mean-pool matmul ------------------------------
    feats = jnp.concatenate(pooled_feats, axis=-1)                 # [N, HIDDEN*(L+1)]
    x_concat = jnp.dot(pool, feats, preferred_element_type=f32)    # [B, HIDDEN*(L+1)]

    # ---- postprocess MLP (approximation, see TODO above) -------------------
    p1 = jnp.maximum(
        jnp.dot(x_concat, w_post1_ref[...], preferred_element_type=f32)
        + b_post1_ref[...], 0.0)
    p2 = jnp.maximum(
        jnp.dot(p1, w_post2_ref[...], preferred_element_type=f32)
        + b_post2_ref[...], 0.0)

    # ---- risk head: Linear(clinical_num + HIDDEN -> 1, bias=False) ---------
    feat = jnp.concatenate([clin_ref[...], p2], axis=-1)
    o_ref[...] = jnp.dot(feat, w_risk_ref[...], preferred_element_type=f32)


# ----------------------------------------------------------------------------
# Parameter construction / packing
# ----------------------------------------------------------------------------
def init_params(key):
    def lin(k, fan_in, fan_out):
        return (1.0 / jnp.sqrt(jnp.float32(fan_in))) * jax.random.normal(
            k, (fan_in, fan_out), jnp.float32)

    keys = jax.random.split(key, 4 + 4 * LAYERS)
    ki = iter(keys)
    p = {
        "w_pre": lin(next(ki), F_IN, HIDDEN),
        "b_pre": jnp.zeros((1, HIDDEN), jnp.float32),
        "layers": [],
        "w_post1": lin(next(ki), HIDDEN * (LAYERS + 1), HIDDEN),
        "b_post1": jnp.zeros((1, HIDDEN), jnp.float32),
        "w_post2": lin(next(ki), HIDDEN, HIDDEN),
        "b_post2": jnp.zeros((1, HIDDEN), jnp.float32),
        "w_risk": lin(next(ki), CLINICAL + HIDDEN, 1),    # bias=False
    }
    for _ in range(LAYERS):
        p["layers"].append({
            "w_src": lin(next(ki), HIDDEN, HIDDEN),
            "w_dst": lin(next(ki), HIDDEN, HIDDEN),
            "a_src": (1.0 / jnp.sqrt(jnp.float32(DIM))) *
                     jax.random.normal(next(ki), (HEADS, DIM), jnp.float32),
            "a_dst": (1.0 / jnp.sqrt(jnp.float32(DIM))) *
                     jax.random.normal(next(ki), (HEADS, DIM), jnp.float32),
            "bias": jnp.zeros((1, HIDDEN), jnp.float32),
            "ln_g": jnp.ones((1, HIDDEN), jnp.float32),
            "ln_b": jnp.zeros((1, HIDDEN), jnp.float32),
            "prelu": jnp.full((1, HIDDEN), 0.25, jnp.float32),
        })
    return p


def _pack_layer_params(layers):
    """Pack per-layer GAT params into MXU-friendly stacked/fused layouts (f32)."""
    eye = jnp.eye(HEADS, dtype=jnp.float32)

    def head_rows(a):   # [HEADS, DIM] -> [HEADS, HIDDEN], row h holds a[h] at cols h*DIM:
        return (eye[:, :, None] * a[None, :, :]).reshape(HEADS, HEADS * DIM)

    w_sd = jnp.stack([jnp.concatenate([lp["w_src"], lp["w_dst"]], axis=1)
                      for lp in layers])                              # [L, HIDDEN, 2*HIDDEN]
    a_src = jnp.stack([head_rows(lp["a_src"]) for lp in layers])      # [L, HEADS, HIDDEN]
    a_dst = jnp.stack([head_rows(lp["a_dst"]) for lp in layers])      # [L, HEADS, HIDDEN]
    lvec = jnp.stack([jnp.concatenate([lp["bias"], lp["ln_g"], lp["ln_b"], lp["prelu"]],
                                      axis=0) for lp in layers])      # [L, 4, HIDDEN]
    return w_sd, a_src, a_dst, lvec


def _cost_estimate(N, B):
    flops = (2 * N * F_IN * HIDDEN                                     # preprocess
             + LAYERS * (2 * N * HIDDEN * 2 * HIDDEN                   # src/dst proj
                         + 2 * 2 * HEADS * HIDDEN * N                  # alpha logits
                         + HEADS * 2 * N * N * DIM                     # aggregation
                         + 8 * HEADS * N * N)                          # softmax elementwise
             + 2 * B * N * HIDDEN * (LAYERS + 1)                       # pooled matmul
             + 2 * B * HIDDEN * (LAYERS + 1) * HIDDEN                  # post1
             + 2 * B * HIDDEN * HIDDEN                                 # post2
             + 2 * B * (CLINICAL + HIDDEN))                            # risk head
    transcendentals = LAYERS * HEADS * N * N
    param_elems = (F_IN * HIDDEN + HIDDEN
                   + LAYERS * (HIDDEN * 2 * HIDDEN + 2 * HEADS * HIDDEN + 4 * HIDDEN)
                   + HIDDEN * (LAYERS + 1) * HIDDEN + HIDDEN
                   + HIDDEN * HIDDEN + HIDDEN + (CLINICAL + HIDDEN))
    bytes_accessed = 4 * (N * N + N * F_IN + B * N + B * CLINICAL + param_elems + B)
    return pl.CostEstimate(flops=int(flops),
                           transcendentals=int(transcendentals),
                           bytes_accessed=int(bytes_accessed))


# ----------------------------------------------------------------------------
# Forward (eval mode): one fused pallas_call
# ----------------------------------------------------------------------------
def forward(params, node_x, adj, batch, age, stage):
    B = age.shape[0]
    N = node_x.shape[0]

    # clinical_concat = cat([age, stage], dim=1)  -> [B, 2]
    clinical = jnp.stack([age, stage.astype(jnp.float32)], axis=1)

    # global_mean_pool as a [B, N] averaging matrix (applied inside the kernel)
    onehot = jax.nn.one_hot(batch, B, dtype=jnp.float32).T            # [B, N]
    pool = onehot / jnp.maximum(jnp.sum(onehot, axis=1, keepdims=True), 1.0)

    w_sd, a_src, a_dst, lvec = _pack_layer_params(params["layers"])

    risk = pl.pallas_call(
        _fused_forward_kernel,
        out_shape=jax.ShapeDtypeStruct((B, 1), jnp.float32),
        cost_estimate=_cost_estimate(N, B),
    )(node_x.astype(jnp.float32),
      adj.astype(jnp.float32),               # {0,1} mask, f32 (VALU-friendly on v5e)
      pool,
      clinical,
      params["w_pre"], params["b_pre"],
      w_sd, a_src, a_dst, lvec,
      params["w_post1"], params["b_post1"],
      params["w_post2"], params["b_post2"],
      params["w_risk"])
    return risk


# ----------------------------------------------------------------------------
# Example run
# ----------------------------------------------------------------------------
if __name__ == "__main__":
    key = jax.random.PRNGKey(0)
    k_par, k_x, k_adj, k_age, k_stg = jax.random.split(key, 5)

    B = 2                    # graphs (patients)
    NODES_PER_GRAPH = 8
    N = B * NODES_PER_GRAPH  # 16 nodes total

    params = init_params(k_par)

    node_x = jax.random.normal(k_x, (N, F_IN), jnp.float32)
    batch = jnp.repeat(jnp.arange(B, dtype=jnp.int32), NODES_PER_GRAPH)

    # block-diagonal random adjacency + self loops (GATConv add_self_loops)
    rand_adj = (jax.random.uniform(k_adj, (N, N)) < 0.3).astype(jnp.float32)
    same_graph = (batch[:, None] == batch[None, :]).astype(jnp.float32)
    adj = jnp.maximum(rand_adj * same_graph, jnp.eye(N, dtype=jnp.float32))

    age = jax.random.normal(k_age, (B,), jnp.float32)
    stage = jax.random.randint(k_stg, (B,), 0, 5).astype(jnp.float32)

    risk = jax.jit(forward)(params, node_x, adj, batch, age, stage)
    risk = jax.block_until_ready(risk)
    assert risk.shape == (B, 1)
    assert bool(jnp.all(jnp.isfinite(risk)))
    print("KERNEL_OK")
</pallas_src>

<mosaic_0001>
module attributes {stable_mosaic.version = 11 : i64} {
  func.func @_fused_forward_kernel(%arg0: memref<16x16xf32, #tpu.memory_space<vmem>>, %arg1: memref<16x16xf32, #tpu.memory_space<vmem>>, %arg2: memref<2x16xf32, #tpu.memory_space<vmem>>, %arg3: memref<2x2xf32, #tpu.memory_space<vmem>>, %arg4: memref<16x16xf32, #tpu.memory_space<vmem>>, %arg5: memref<1x16xf32, #tpu.memory_space<vmem>>, %arg6: memref<2x16x32xf32, #tpu.memory_space<vmem>>, %arg7: memref<2x2x16xf32, #tpu.memory_space<vmem>>, %arg8: memref<2x2x16xf32, #tpu.memory_space<vmem>>, %arg9: memref<2x4x16xf32, #tpu.memory_space<vmem>>, %arg10: memref<48x16xf32, #tpu.memory_space<vmem>>, %arg11: memref<1x16xf32, #tpu.memory_space<vmem>>, %arg12: memref<16x16xf32, #tpu.memory_space<vmem>>, %arg13: memref<1x16xf32, #tpu.memory_space<vmem>>, %arg14: memref<18x1xf32, #tpu.memory_space<vmem>>, %arg15: memref<2x1xf32, #tpu.memory_space<vmem>>) attributes {dimension_semantics = [], scalar_prefetch = 0 : i64, scratch_operands = 0 : i64, tpu.core_type = #tpu.core_type<tc>} {
    %c0 = arith.constant 0 : index
    %c0_0 = arith.constant 0 : index
    %0 = vector.load %arg1[%c0, %c0_0] : memref<16x16xf32, #tpu.memory_space<vmem>>, vector<16x16xf32>
    %cst = arith.constant 1.000000e+00 : f32
    %1 = vector.broadcast %cst : f32 to vector<16x16xf32>
    %2 = arith.subf %0, %1 : vector<16x16xf32>
    %cst_1 = arith.constant 1.000000e+09 : f32
    %3 = vector.broadcast %cst_1 : f32 to vector<16x16xf32>
    %4 = arith.mulf %2, %3 : vector<16x16xf32>
    %c0_2 = arith.constant 0 : index
    %c0_3 = arith.constant 0 : index
    %5 = vector.load %arg2[%c0_2, %c0_3] : memref<2x16xf32, #tpu.memory_space<vmem>>, vector<2x16xf32>
    %c0_4 = arith.constant 0 : index
    %c0_5 = arith.constant 0 : index
    %6 = vector.load %arg0[%c0_4, %c0_5] : memref<16x16xf32, #tpu.memory_space<vmem>>, vector<16x16xf32>
    %c0_6 = arith.constant 0 : index
    %c0_7 = arith.constant 0 : index
    %7 = vector.load %arg4[%c0_6, %c0_7] : memref<16x16xf32, #tpu.memory_space<vmem>>, vector<16x16xf32>
    %cst_8 = arith.constant dense<0.000000e+00> : vector<16x16xf32>
    %8 = tpu.matmul %6, %7, %cst_8 {dimension_numbers = #tpu.dot_dimension_numbers<[1], [0], [0], [1], [0, 0, 1, 1], [], []>} : vector<16x16xf32>, vector<16x16xf32>, vector<16x16xf32> -> vector<16x16xf32>
    %c0_9 = arith.constant 0 : index
    %c0_10 = arith.constant 0 : index
    %9 = vector.load %arg5[%c0_9, %c0_10] : memref<1x16xf32, #tpu.memory_space<vmem>>, vector<1x16xf32>
    %10 = vector.broadcast %9 : vector<1x16xf32> to vector<16x16xf32>
    %11 = arith.addf %8, %10 : vector<16x16xf32>
    %cst_11 = arith.constant 0.000000e+00 : f32
    %12 = vector.broadcast %cst_11 : f32 to vector<16x16xf32>
    %13 = arith.maximumf %11, %12 : vector<16x16xf32>
    %c0_12 = arith.constant 0 : index
    %c0_13 = arith.constant 0 : index
    %c0_14 = arith.constant 0 : index
    %14 = vector.load %arg9[%c0_12, %c0_13, %c0_14] : memref<2x4x16xf32, #tpu.memory_space<vmem>>, vector<1x4x16xf32>
    %15 = vector.shape_cast %14 : vector<1x4x16xf32> to vector<4x16xf32>
    %c0_15 = arith.constant 0 : index
    %c0_16 = arith.constant 0 : index
    %c0_17 = arith.constant 0 : index
    %16 = vector.load %arg6[%c0_15, %c0_16, %c0_17] : memref<2x16x32xf32, #tpu.memory_space<vmem>>, vector<1x16x32xf32>
    %17 = vector.shape_cast %16 : vector<1x16x32xf32> to vector<16x32xf32>
    %cst_18 = arith.constant dense<0.000000e+00> : vector<16x32xf32>
    %18 = tpu.matmul %13, %17, %cst_18 {dimension_numbers = #tpu.dot_dimension_numbers<[1], [0], [0], [1], [0, 0, 1, 1], [], []>} : vector<16x16xf32>, vector<16x32xf32>, vector<16x32xf32> -> vector<16x32xf32>
    %19 = vector.extract_strided_slice %18 {offsets = [0, 0], sizes = [16, 16], strides = [1, 1]} : vector<16x32xf32> to vector<16x16xf32>
    %20 = vector.extract_strided_slice %18 {offsets = [0, 16], sizes = [16, 16], strides = [1, 1]} : vector<16x32xf32> to vector<16x16xf32>
    %c0_19 = arith.constant 0 : index
    %c0_20 = arith.constant 0 : index
    %c0_21 = arith.constant 0 : index
    %21 = vector.load %arg7[%c0_19, %c0_20, %c0_21] : memref<2x2x16xf32, #tpu.memory_space<vmem>>, vector<1x2x16xf32>
    %22 = vector.shape_cast %21 : vector<1x2x16xf32> to vector<2x16xf32>
    %cst_22 = arith.constant dense<0.000000e+00> : vector<2x16xf32>
    %23 = tpu.matmul %22, %19, %cst_22 {dimension_numbers = #tpu.dot_dimension_numbers<[1], [1], [0], [0], [0, 0, 1, 0], [], []>} : vector<2x16xf32>, vector<16x16xf32>, vector<2x16xf32> -> vector<2x16xf32>
    %c0_23 = arith.constant 0 : index
    %c0_24 = arith.constant 0 : index
    %c0_25 = arith.constant 0 : index
    %24 = vector.load %arg8[%c0_23, %c0_24, %c0_25] : memref<2x2x16xf32, #tpu.memory_space<vmem>>, vector<1x2x16xf32>
    %25 = vector.shape_cast %24 : vector<1x2x16xf32> to vector<2x16xf32>
    %cst_26 = arith.constant dense<0.000000e+00> : vector<2x16xf32>
    %26 = tpu.matmul %25, %20, %cst_26 {dimension_numbers = #tpu.dot_dimension_numbers<[1], [1], [0], [0], [0, 0, 1, 0], [], []>} : vector<2x16xf32>, vector<16x16xf32>, vector<2x16xf32> -> vector<2x16xf32>
    %27 = vector.shape_cast %26 : vector<2x16xf32> to vector<2x16x1xf32>
    %28 = vector.shape_cast %23 : vector<2x16xf32> to vector<2x1x16xf32>
    %29 = vector.broadcast %27 : vector<2x16x1xf32> to vector<2x16x16xf32>
    %30 = vector.broadcast %28 : vector<2x1x16xf32> to vector<2x16x16xf32>
    %31 = arith.addf %29, %30 : vector<2x16x16xf32>
    %cst_27 = arith.constant 2.000000e-01 : f32
    %32 = vector.broadcast %cst_27 : f32 to vector<2x16x16xf32>
    %33 = arith.mulf %32, %31 : vector<2x16x16xf32>
    %34 = arith.maximumf %31, %33 : vector<2x16x16xf32>
    %35 = vector.shape_cast %4 : vector<16x16xf32> to vector<1x16x16xf32>
    %36 = vector.broadcast %35 : vector<1x16x16xf32> to vector<2x16x16xf32>
    %37 = arith.addf %34, %36 : vector<2x16x16xf32>
    %cst_28 = arith.constant dense<0xFF800000> : vector<2x16xf32>
    %38 = vector.multi_reduction <maximumf>, %37, %cst_28 [2] : vector<2x16x16xf32> to vector<2x16xf32>
    %39 = vector.shape_cast %38 : vector<2x16xf32> to vector<2x16x1xf32>
    %40 = vector.broadcast %39 : vector<2x16x1xf32> to vector<2x16x16xf32>
    %41 = arith.subf %37, %40 : vector<2x16x16xf32>
    %42 = math.exp %41 : vector<2x16x16xf32>
    %cst_29 = arith.constant dense<0.000000e+00> : vector<2x16xf32>
    %43 = vector.multi_reduction <add>, %42, %cst_29 [2] : vector<2x16x16xf32> to vector<2x16xf32>
    %44 = vector.shape_cast %43 : vector<2x16xf32> to vector<2x16x1xf32>
    %45 = tpu.reciprocal %44 {approx = true} : vector<2x16x1xf32> -> vector<2x16x1xf32>
    %46 = vector.broadcast %45 : vector<2x16x1xf32> to vector<2x16x16xf32>
    %47 = arith.mulf %42, %46 : vector<2x16x16xf32>
    %48 = vector.extract_strided_slice %47 {offsets = [0, 0, 0], sizes = [1, 16, 16], strides = [1, 1, 1]} : vector<2x16x16xf32> to vector<1x16x16xf32>
    %49 = vector.shape_cast %48 : vector<1x16x16xf32> to vector<16x16xf32>
    %50 = vector.extract_strided_slice %19 {offsets = [0, 0], sizes = [16, 8], strides = [1, 1]} : vector<16x16xf32> to vector<16x8xf32>
    %cst_30 = arith.constant dense<0.000000e+00> : vector<16x8xf32>
    %51 = tpu.matmul %49, %50, %cst_30 {dimension_numbers = #tpu.dot_dimension_numbers<[1], [0], [0], [1], [0, 0, 1, 1], [], []>} : vector<16x16xf32>, vector<16x8xf32>, vector<16x8xf32> -> vector<16x8xf32>
    %52 = vector.extract_strided_slice %47 {offsets = [1, 0, 0], sizes = [1, 16, 16], strides = [1, 1, 1]} : vector<2x16x16xf32> to vector<1x16x16xf32>
    %53 = vector.shape_cast %52 : vector<1x16x16xf32> to vector<16x16xf32>
    %54 = vector.extract_strided_slice %19 {offsets = [0, 8], sizes = [16, 8], strides = [1, 1]} : vector<16x16xf32> to vector<16x8xf32>
    %cst_31 = arith.constant dense<0.000000e+00> : vector<16x8xf32>
    %55 = tpu.matmul %53, %54, %cst_31 {dimension_numbers = #tpu.dot_dimension_numbers<[1], [0], [0], [1], [0, 0, 1, 1], [], []>} : vector<16x16xf32>, vector<16x8xf32>, vector<16x8xf32> -> vector<16x8xf32>
    %56 = tpu.concatenate %51, %55 in 1 : vector<16x8xf32>, vector<16x8xf32> -> vector<16x16xf32>
    %57 = vector.extract_strided_slice %15 {offsets = [0, 0], sizes = [1, 16], strides = [1, 1]} : vector<4x16xf32> to vector<1x16xf32>
    %58 = vector.broadcast %57 : vector<1x16xf32> to vector<16x16xf32>
    %59 = arith.addf %56, %58 : vector<16x16xf32>
    %cst_32 = arith.constant dense<0.000000e+00> : vector<16xf32>
    %60 = vector.multi_reduction <add>, %59, %cst_32 [1] : vector<16x16xf32> to vector<16xf32>
    %61 = vector.shape_cast %60 : vector<16xf32> to vector<16x1xf32>
    %cst_33 = arith.constant 1.600000e+01 : f32
    %62 = vector.broadcast %cst_33 : f32 to vector<16x1xf32>
    %63 = arith.divf %61, %62 : vector<16x1xf32>
    %64 = vector.broadcast %63 : vector<16x1xf32> to vector<16x16xf32>
    %65 = arith.subf %59, %64 : vector<16x16xf32>
    %66 = arith.mulf %65, %65 : vector<16x16xf32>
    %cst_34 = arith.constant dense<0.000000e+00> : vector<16xf32>
    %67 = vector.multi_reduction <add>, %66, %cst_34 [1] : vector<16x16xf32> to vector<16xf32>
    %68 = vector.shape_cast %67 : vector<16xf32> to vector<16x1xf32>
    %cst_35 = arith.constant 1.600000e+01 : f32
    %69 = vector.broadcast %cst_35 : f32 to vector<16x1xf32>
    %70 = arith.divf %68, %69 : vector<16x1xf32>
    %71 = vector.broadcast %63 : vector<16x1xf32> to vector<16x16xf32>
    %72 = arith.subf %59, %71 : vector<16x16xf32>
    %cst_36 = arith.constant 9.99999974E-6 : f32
    %73 = vector.broadcast %cst_36 : f32 to vector<16x1xf32>
    %74 = arith.addf %70, %73 : vector<16x1xf32>
    %75 = math.rsqrt %74 : vector<16x1xf32>
    %76 = vector.broadcast %75 : vector<16x1xf32> to vector<16x16xf32>
    %77 = arith.mulf %72, %76 : vector<16x16xf32>
    %78 = vector.extract_strided_slice %15 {offsets = [1, 0], sizes = [1, 16], strides = [1, 1]} : vector<4x16xf32> to vector<1x16xf32>
    %79 = vector.broadcast %78 : vector<1x16xf32> to vector<16x16xf32>
    %80 = arith.mulf %77, %79 : vector<16x16xf32>
    %81 = vector.extract_strided_slice %15 {offsets = [2, 0], sizes = [1, 16], strides = [1, 1]} : vector<4x16xf32> to vector<1x16xf32>
    %82 = vector.broadcast %81 : vector<1x16xf32> to vector<16x16xf32>
    %83 = arith.addf %80, %82 : vector<16x16xf32>
    %cst_37 = arith.constant 0.000000e+00 : f32
    %84 = vector.broadcast %cst_37 : f32 to vector<16x16xf32>
    %85 = arith.cmpf ogt, %83, %84 : vector<16x16xf32>
    %86 = vector.extract_strided_slice %15 {offsets = [3, 0], sizes = [1, 16], strides = [1, 1]} : vector<4x16xf32> to vector<1x16xf32>
    %87 = vector.broadcast %86 : vector<1x16xf32> to vector<16x16xf32>
    %88 = arith.mulf %87, %83 : vector<16x16xf32>
    %89 = arith.select %85, %83, %88 : vector<16x16xi1>, vector<16x16xf32>
    %90 = arith.addf %89, %13 : vector<16x16xf32>
    %c1 = arith.constant 1 : index
    %c0_38 = arith.constant 0 : index
    %c0_39 = arith.constant 0 : index
    %91 = vector.load %arg9[%c1, %c0_38, %c0_39] : memref<2x4x16xf32, #tpu.memory_space<vmem>>, vector<1x4x16xf32>
    %92 = vector.shape_cast %91 : vector<1x4x16xf32> to vector<4x16xf32>
    %c1_40 = arith.constant 1 : index
    %c0_41 = arith.constant 0 : index
    %c0_42 = arith.constant 0 : index
    %93 = vector.load %arg6[%c1_40, %c0_41, %c0_42] : memref<2x16x32xf32, #tpu.memory_space<vmem>>, vector<1x16x32xf32>
    %94 = vector.shape_cast %93 : vector<1x16x32xf32> to vector<16x32xf32>
    %cst_43 = arith.constant dense<0.000000e+00> : vector<16x32xf32>
    %95 = tpu.matmul %90, %94, %cst_43 {dimension_numbers = #tpu.dot_dimension_numbers<[1], [0], [0], [1], [0, 0, 1, 1], [], []>} : vector<16x16xf32>, vector<16x32xf32>, vector<16x32xf32> -> vector<16x32xf32>
    %96 = vector.extract_strided_slice %95 {offsets = [0, 0], sizes = [16, 16], strides = [1, 1]} : vector<16x32xf32> to vector<16x16xf32>
    %97 = vector.extract_strided_slice %95 {offsets = [0, 16], sizes = [16, 16], strides = [1, 1]} : vector<16x32xf32> to vector<16x16xf32>
    %c1_44 = arith.constant 1 : index
    %c0_45 = arith.constant 0 : index
    %c0_46 = arith.constant 0 : index
    %98 = vector.load %arg7[%c1_44, %c0_45, %c0_46] : memref<2x2x16xf32, #tpu.memory_space<vmem>>, vector<1x2x16xf32>
    %99 = vector.shape_cast %98 : vector<1x2x16xf32> to vector<2x16xf32>
    %cst_47 = arith.constant dense<0.000000e+00> : vector<2x16xf32>
    %100 = tpu.matmul %99, %96, %cst_47 {dimension_numbers = #tpu.dot_dimension_numbers<[1], [1], [0], [0], [0, 0, 1, 0], [], []>} : vector<2x16xf32>, vector<16x16xf32>, vector<2x16xf32> -> vector<2x16xf32>
    %c1_48 = arith.constant 1 : index
    %c0_49 = arith.constant 0 : index
    %c0_50 = arith.constant 0 : index
    %101 = vector.load %arg8[%c1_48, %c0_49, %c0_50] : memref<2x2x16xf32, #tpu.memory_space<vmem>>, vector<1x2x16xf32>
    %102 = vector.shape_cast %101 : vector<1x2x16xf32> to vector<2x16xf32>
    %cst_51 = arith.constant dense<0.000000e+00> : vector<2x16xf32>
    %103 = tpu.matmul %102, %97, %cst_51 {dimension_numbers = #tpu.dot_dimension_numbers<[1], [1], [0], [0], [0, 0, 1, 0], [], []>} : vector<2x16xf32>, vector<16x16xf32>, vector<2x16xf32> -> vector<2x16xf32>
    %104 = vector.shape_cast %103 : vector<2x16xf32> to vector<2x16x1xf32>
    %105 = vector.shape_cast %100 : vector<2x16xf32> to vector<2x1x16xf32>
    %106 = vector.broadcast %104 : vector<2x16x1xf32> to vector<2x16x16xf32>
    %107 = vector.broadcast %105 : vector<2x1x16xf32> to vector<2x16x16xf32>
    %108 = arith.addf %106, %107 : vector<2x16x16xf32>
    %cst_52 = arith.constant 2.000000e-01 : f32
    %109 = vector.broadcast %cst_52 : f32 to vector<2x16x16xf32>
    %110 = arith.mulf %109, %108 : vector<2x16x16xf32>
    %111 = arith.maximumf %108, %110 : vector<2x16x16xf32>
    %112 = vector.shape_cast %4 : vector<16x16xf32> to vector<1x16x16xf32>
    %113 = vector.broadcast %112 : vector<1x16x16xf32> to vector<2x16x16xf32>
    %114 = arith.addf %111, %113 : vector<2x16x16xf32>
    %cst_53 = arith.constant dense<0xFF800000> : vector<2x16xf32>
    %115 = vector.multi_reduction <maximumf>, %114, %cst_53 [2] : vector<2x16x16xf32> to vector<2x16xf32>
    %116 = vector.shape_cast %115 : vector<2x16xf32> to vector<2x16x1xf32>
    %117 = vector.broadcast %116 : vector<2x16x1xf32> to vector<2x16x16xf32>
    %118 = arith.subf %114, %117 : vector<2x16x16xf32>
    %119 = math.exp %118 : vector<2x16x16xf32>
    %cst_54 = arith.constant dense<0.000000e+00> : vector<2x16xf32>
    %120 = vector.multi_reduction <add>, %119, %cst_54 [2] : vector<2x16x16xf32> to vector<2x16xf32>
    %121 = vector.shape_cast %120 : vector<2x16xf32> to vector<2x16x1xf32>
    %122 = tpu.reciprocal %121 {approx = true} : vector<2x16x1xf32> -> vector<2x16x1xf32>
    %123 = vector.broadcast %122 : vector<2x16x1xf32> to vector<2x16x16xf32>
    %124 = arith.mulf %119, %123 : vector<2x16x16xf32>
    %125 = vector.extract_strided_slice %124 {offsets = [0, 0, 0], sizes = [1, 16, 16], strides = [1, 1, 1]} : vector<2x16x16xf32> to vector<1x16x16xf32>
    %126 = vector.shape_cast %125 : vector<1x16x16xf32> to vector<16x16xf32>
    %127 = vector.extract_strided_slice %96 {offsets = [0, 0], sizes = [16, 8], strides = [1, 1]} : vector<16x16xf32> to vector<16x8xf32>
    %cst_55 = arith.constant dense<0.000000e+00> : vector<16x8xf32>
    %128 = tpu.matmul %126, %127, %cst_55 {dimension_numbers = #tpu.dot_dimension_numbers<[1], [0], [0], [1], [0, 0, 1, 1], [], []>} : vector<16x16xf32>, vector<16x8xf32>, vector<16x8xf32> -> vector<16x8xf32>
    %129 = vector.extract_strided_slice %124 {offsets = [1, 0, 0], sizes = [1, 16, 16], strides = [1, 1, 1]} : vector<2x16x16xf32> to vector<1x16x16xf32>
    %130 = vector.shape_cast %129 : vector<1x16x16xf32> to vector<16x16xf32>
    %131 = vector.extract_strided_slice %96 {offsets = [0, 8], sizes = [16, 8], strides = [1, 1]} : vector<16x16xf32> to vector<16x8xf32>
    %cst_56 = arith.constant dense<0.000000e+00> : vector<16x8xf32>
    %132 = tpu.matmul %130, %131, %cst_56 {dimension_numbers = #tpu.dot_dimension_numbers<[1], [0], [0], [1], [0, 0, 1, 1], [], []>} : vector<16x16xf32>, vector<16x8xf32>, vector<16x8xf32> -> vector<16x8xf32>
    %133 = tpu.concatenate %128, %132 in 1 : vector<16x8xf32>, vector<16x8xf32> -> vector<16x16xf32>
    %134 = vector.extract_strided_slice %92 {offsets = [0, 0], sizes = [1, 16], strides = [1, 1]} : vector<4x16xf32> to vector<1x16xf32>
    %135 = vector.broadcast %134 : vector<1x16xf32> to vector<16x16xf32>
    %136 = arith.addf %133, %135 : vector<16x16xf32>
    %cst_57 = arith.constant dense<0.000000e+00> : vector<16xf32>
    %137 = vector.multi_reduction <add>, %136, %cst_57 [1] : vector<16x16xf32> to vector<16xf32>
    %138 = vector.shape_cast %137 : vector<16xf32> to vector<16x1xf32>
    %cst_58 = arith.constant 1.600000e+01 : f32
    %139 = vector.broadcast %cst_58 : f32 to vector<16x1xf32>
    %140 = arith.divf %138, %139 : vector<16x1xf32>
    %141 = vector.broadcast %140 : vector<16x1xf32> to vector<16x16xf32>
    %142 = arith.subf %136, %141 : vector<16x16xf32>
    %143 = arith.mulf %142, %142 : vector<16x16xf32>
    %cst_59 = arith.constant dense<0.000000e+00> : vector<16xf32>
    %144 = vector.multi_reduction <add>, %143, %cst_59 [1] : vector<16x16xf32> to vector<16xf32>
    %145 = vector.shape_cast %144 : vector<16xf32> to vector<16x1xf32>
    %cst_60 = arith.constant 1.600000e+01 : f32
    %146 = vector.broadcast %cst_60 : f32 to vector<16x1xf32>
    %147 = arith.divf %145, %146 : vector<16x1xf32>
    %148 = vector.broadcast %140 : vector<16x1xf32> to vector<16x16xf32>
    %149 = arith.subf %136, %148 : vector<16x16xf32>
    %cst_61 = arith.constant 9.99999974E-6 : f32
    %150 = vector.broadcast %cst_61 : f32 to vector<16x1xf32>
    %151 = arith.addf %147, %150 : vector<16x1xf32>
    %152 = math.rsqrt %151 : vector<16x1xf32>
    %153 = vector.broadcast %152 : vector<16x1xf32> to vector<16x16xf32>
    %154 = arith.mulf %149, %153 : vector<16x16xf32>
    %155 = vector.extract_strided_slice %92 {offsets = [1, 0], sizes = [1, 16], strides = [1, 1]} : vector<4x16xf32> to vector<1x16xf32>
    %156 = vector.broadcast %155 : vector<1x16xf32> to vector<16x16xf32>
    %157 = arith.mulf %154, %156 : vector<16x16xf32>
    %158 = vector.extract_strided_slice %92 {offsets = [2, 0], sizes = [1, 16], strides = [1, 1]} : vector<4x16xf32> to vector<1x16xf32>
    %159 = vector.broadcast %158 : vector<1x16xf32> to vector<16x16xf32>
    %160 = arith.addf %157, %159 : vector<16x16xf32>
    %cst_62 = arith.constant 0.000000e+00 : f32
    %161 = vector.broadcast %cst_62 : f32 to vector<16x16xf32>
    %162 = arith.cmpf ogt, %160, %161 : vector<16x16xf32>
    %163 = vector.extract_strided_slice %92 {offsets = [3, 0], sizes = [1, 16], strides = [1, 1]} : vector<4x16xf32> to vector<1x16xf32>
    %164 = vector.broadcast %163 : vector<1x16xf32> to vector<16x16xf32>
    %165 = arith.mulf %164, %160 : vector<16x16xf32>
    %166 = arith.select %162, %160, %165 : vector<16x16xi1>, vector<16x16xf32>
    %167 = tpu.concatenate %13, %89, %166 in 1 : vector<16x16xf32>, vector<16x16xf32>, vector<16x16xf32> -> vector<16x48xf32>
    %cst_63 = arith.constant dense<0.000000e+00> : vector<2x48xf32>
    %168 = tpu.matmul %5, %167, %cst_63 {dimension_numbers = #tpu.dot_dimension_numbers<[1], [0], [0], [1], [0, 0, 1, 1], [], []>} : vector<2x16xf32>, vector<16x48xf32>, vector<2x48xf32> -> vector<2x48xf32>
    %c0_64 = arith.constant 0 : index
    %c0_65 = arith.constant 0 : index
    %169 = vector.load %arg10[%c0_64, %c0_65] : memref<48x16xf32, #tpu.memory_space<vmem>>, vector<48x16xf32>
    %cst_66 = arith.constant dense<0.000000e+00> : vector<2x16xf32>
    %170 = tpu.matmul %168, %169, %cst_66 {dimension_numbers = #tpu.dot_dimension_numbers<[1], [0], [0], [1], [0, 0, 1, 1], [], []>} : vector<2x48xf32>, vector<48x16xf32>, vector<2x16xf32> -> vector<2x16xf32>
    %c0_67 = arith.constant 0 : index
    %c0_68 = arith.constant 0 : index
    %171 = vector.load %arg11[%c0_67, %c0_68] : memref<1x16xf32, #tpu.memory_space<vmem>>, vector<1x16xf32>
    %172 = vector.broadcast %171 : vector<1x16xf32> to vector<2x16xf32>
    %173 = arith.addf %170, %172 : vector<2x16xf32>
    %cst_69 = arith.constant 0.000000e+00 : f32
    %174 = vector.broadcast %cst_69 : f32 to vector<2x16xf32>
    %175 = arith.maximumf %173, %174 : vector<2x16xf32>
    %c0_70 = arith.constant 0 : index
    %c0_71 = arith.constant 0 : index
    %176 = vector.load %arg12[%c0_70, %c0_71] : memref<16x16xf32, #tpu.memory_space<vmem>>, vector<16x16xf32>
    %cst_72 = arith.constant dense<0.000000e+00> : vector<2x16xf32>
    %177 = tpu.matmul %175, %176, %cst_72 {dimension_numbers = #tpu.dot_dimension_numbers<[1], [0], [0], [1], [0, 0, 1, 1], [], []>} : vector<2x16xf32>, vector<16x16xf32>, vector<2x16xf32> -> vector<2x16xf32>
    %c0_73 = arith.constant 0 : index
    %c0_74 = arith.constant 0 : index
    %178 = vector.load %arg13[%c0_73, %c0_74] : memref<1x16xf32, #tpu.memory_space<vmem>>, vector<1x16xf32>
    %179 = vector.broadcast %178 : vector<1x16xf32> to vector<2x16xf32>
    %180 = arith.addf %177, %179 : vector<2x16xf32>
    %cst_75 = arith.constant 0.000000e+00 : f32
    %181 = vector.broadcast %cst_75 : f32 to vector<2x16xf32>
    %182 = arith.maximumf %180, %181 : vector<2x16xf32>
    %c0_76 = arith.constant 0 : index
    %c0_77 = arith.constant 0 : index
    %183 = vector.load %arg3[%c0_76, %c0_77] : memref<2x2xf32, #tpu.memory_space<vmem>>, vector<2x2xf32>
    %184 = tpu.concatenate %183, %182 in 1 : vector<2x2xf32>, vector<2x16xf32> -> vector<2x18xf32>
    %c0_78 = arith.constant 0 : index
    %c0_79 = arith.constant 0 : index
    %185 = vector.load %arg14[%c0_78, %c0_79] : memref<18x1xf32, #tpu.memory_space<vmem>>, vector<18x1xf32>
    %cst_80 = arith.constant dense<0.000000e+00> : vector<2x1xf32>
    %186 = tpu.matmul %184, %185, %cst_80 {dimension_numbers = #tpu.dot_dimension_numbers<[1], [0], [0], [1], [0, 0, 1, 1], [], []>} : vector<2x18xf32>, vector<18x1xf32>, vector<2x1xf32> -> vector<2x1xf32>
    %c0_81 = arith.constant 0 : index
    %c0_82 = arith.constant 0 : index
    %187 = vector.load %arg15[%c0_81, %c0_82] : memref<2x1xf32, #tpu.memory_space<vmem>>, vector<2x1xf32>
    tpu.vector_store %arg15[%c0_81, %c0_82], %186 {strides = array<i32>} : memref<2x1xf32, #tpu.memory_space<vmem>>, vector<2x1xf32>,
    return
  }
}

</mosaic_0001>

<llo_original>
// kernel: forward.1
$region0: #{forward.1}
  #allocation0 [shape = 'u32[]', space=smem, size = 0x4, offset = 0x4, fixed_abs, tag = 'smem constant byte address 0x4 - core index']
  #allocation1 [shape = 'u32[144,128]{1,0:T(1,128)}', space=vmem, size = 0x12000, scoped, tag = 'internal scratch']
  %s0 = inlined_call_operand.vmem [shape: f32[16,16], index: 0, kind: input, shape index: {}]
  %s1 = inlined_call_operand.vmem [shape: f32[16,16], index: 1, kind: input, shape index: {}]
  %s2 = inlined_call_operand.vmem [shape: f32[2,16], index: 2, kind: input, shape index: {}]
  %s3 = inlined_call_operand.vmem [shape: f32[2,2], index: 3, kind: input, shape index: {}]
  %s4 = inlined_call_operand.vmem [shape: f32[16,16], index: 4, kind: input, shape index: {}]
  %s5 = inlined_call_operand.vmem [shape: f32[1,16], index: 5, kind: input, shape index: {}]
  %s6 = inlined_call_operand.vmem [shape: f32[2,16,32], index: 6, kind: input, shape index: {}]
  %s7 = inlined_call_operand.vmem [shape: f32[2,2,16], index: 7, kind: input, shape index: {}]
  %s8 = inlined_call_operand.vmem [shape: f32[2,2,16], index: 8, kind: input, shape index: {}]
  %s9 = inlined_call_operand.vmem [shape: f32[2,4,16], index: 9, kind: input, shape index: {}]
  %s10 = inlined_call_operand.vmem [shape: f32[48,16], index: 10, kind: input, shape index: {}]
  %s11 = inlined_call_operand.vmem [shape: f32[1,16], index: 11, kind: input, shape index: {}]
  %s12 = inlined_call_operand.vmem [shape: f32[16,16], index: 12, kind: input, shape index: {}]
  %s13 = inlined_call_operand.vmem [shape: f32[1,16], index: 13, kind: input, shape index: {}]
  %s14 = inlined_call_operand.vmem [shape: f32[18,1], index: 14, kind: input, shape index: {}]
  %s15 = inlined_call_operand.vmem [shape: f32[2,1], index: 15, kind: output, shape index: {}]
  %s16 = sld [smem:[#allocation0]]
  $region70: #{forward.1} parent=0
    _
  %s18 = ssub.s32 1, %s16
  %s19 = scalar_select 0, %s18, %s16
  // Predicated region
  $region2: #{forward.1} parent=0 // pred_check
    _
  $region3: #{forward.1} parent=0 // pred_check_branch
    %21 = sbr.rel (0) target = $region5
  $region4: #{forward.1} parent=0 // pred_region
    _
  $region5: #{forward.1} parent=0 // pred_fallthru
    _
  // Predicated region
  $region6: #{forward.1} parent=0 // pred_check
    _
  $region7: #{forward.1} parent=0 // pred_check_branch
    %23 = sbr.rel (0) target = $region9
  $region8: #{forward.1} parent=0 // pred_region
    _
  $region9: #{forward.1} parent=0 // pred_fallthru
    _
  // Predicated region
  $region10: #{forward.1} parent=0 // pred_check
    _
  $region11: #{forward.1} parent=0 // pred_check_branch
    %25 = sbr.rel (0) target = $region13
  $region12: #{forward.1} parent=0 // pred_region
    _
  $region13: #{forward.1} parent=0 // pred_fallthru
    _
  // Predicated region
  $region14: #{forward.1} parent=0 // pred_check
    _
  $region15: #{forward.1} parent=0 // pred_check_branch
    %27 = sbr.rel (0) target = $region17
  $region16: #{forward.1} parent=0 // pred_region
    _
  $region17: #{forward.1} parent=0 // pred_fallthru
    _
  // Predicated region
  $region18: #{forward.1} parent=0 // pred_check
    _
  $region19: #{forward.1} parent=0 // pred_check_branch
    %29 = sbr.rel (0) target = $region21
  $region20: #{forward.1} parent=0 // pred_region
    _
  $region21: #{forward.1} parent=0 // pred_fallthru
    _
  // Predicated region
  $region22: #{forward.1} parent=0 // pred_check
    _
  $region23: #{forward.1} parent=0 // pred_check_branch
    %31 = sbr.rel (0) target = $region25
  $region24: #{forward.1} parent=0 // pred_region
    _
  $region25: #{forward.1} parent=0 // pred_fallthru
    _
  // Predicated region
  $region26: #{forward.1} parent=0 // pred_check
    _
  $region27: #{forward.1} parent=0 // pred_check_branch
    %33 = sbr.rel (0) target = $region29
  $region28: #{forward.1} parent=0 // pred_region
    _
  $region29: #{forward.1} parent=0 // pred_fallthru
    _
  // Predicated region
  $region30: #{forward.1} parent=0 // pred_check
    _
  $region31: #{forward.1} parent=0 // pred_check_branch
    %35 = sbr.rel (0) target = $region33
  $region32: #{forward.1} parent=0 // pred_region
    _
  $region33: #{forward.1} parent=0 // pred_fallthru
    _
  // Predicated region
  $region34: #{forward.1} parent=0 // pred_check
    _
  $region35: #{forward.1} parent=0 // pred_check_branch
    %37 = sbr.rel (0) target = $region37
  $region36: #{forward.1} parent=0 // pred_region
    _
  $region37: #{forward.1} parent=0 // pred_fallthru
    _
  // Predicated region
  $region38: #{forward.1} parent=0 // pred_check
    _
  $region39: #{forward.1} parent=0 // pred_check_branch
    %39 = sbr.rel (0) target = $region41
  $region40: #{forward.1} parent=0 // pred_region
    _
  $region41: #{forward.1} parent=0 // pred_fallthru
    _
  // Predicated region
  $region42: #{forward.1} parent=0 // pred_check
    _
  $region43: #{forward.1} parent=0 // pred_check_branch
    %41 = sbr.rel (0) target = $region45
  $region44: #{forward.1} parent=0 // pred_region
    _
  $region45: #{forward.1} parent=0 // pred_fallthru
    _
  // Predicated region
  $region46: #{forward.1} parent=0 // pred_check
    _
  $region47: #{forward.1} parent=0 // pred_check_branch
    %43 = sbr.rel (0) target = $region49
  $region48: #{forward.1} parent=0 // pred_region
    _
  $region49: #{forward.1} parent=0 // pred_fallthru
    _
  // Predicated region
  $region50: #{forward.1} parent=0 // pred_check
    _
  $region51: #{forward.1} parent=0 // pred_check_branch
    %45 = sbr.rel (0) target = $region53
  $region52: #{forward.1} parent=0 // pred_region
    _
  $region53: #{forward.1} parent=0 // pred_fallthru
    _
  // Predicated region
  $region54: #{forward.1} parent=0 // pred_check
    _
  $region55: #{forward.1} parent=0 // pred_check_branch
    %47 = sbr.rel (0) target = $region57
  $region56: #{forward.1} parent=0 // pred_region
    _
  $region57: #{forward.1} parent=0 // pred_fallthru
    _
  // Predicated region
  $region58: #{forward.1} parent=0 // pred_check
    _
  $region59: #{forward.1} parent=0 // pred_check_branch
    %49 = sbr.rel (0) target = $region61
  $region60: #{forward.1} parent=0 // pred_region
    _
  $region61: #{forward.1} parent=0 // pred_fallthru
    _
  %v50 = vld [vmem:[%s1] sm:$0xff]
  %v51 = vld [vmem:[%s1 + $0x8] sm:$0xff]
  %v52 = vsub.f32 %v50, 1.0
  %v53 = vsub.f32 %v51, 1.0
  %v54 = vmul.f32 %v52, 1e+09
  %v55 = vmul.f32 %v53, 1e+09
  %v56 = vld [vmem:[%s2] sm:$0x3]
  %v57 = vld [vmem:[%s0] sm:$0xff]
  %v58 = vld [vmem:[%s0 + $0x8] sm:$0xff]
  %v59 = vld [vmem:[%s4] sm:$0xff]
  %v60 = vld [vmem:[%s4 + $0x8] sm:$0xff]
  %v61 = vld [vmem:[%s5] sm:$0x1]
  %v63 = vlaneseq
  %v64 = vshrl.u32 %v63, 7
  %v65 = vsub.s32 0, %v64
  %v66 = vrot.slane %v61, %v65
  %vm68 = vcmask 130048
  %v70 = vsel %vm68, %v57, 0
  %v73 = vsel %vm68, %v58, 0
  %75 = vmatprep.subr.mxu0 0.0
  %76 = vmatpush1.msra.mxu0 0.0
  %77 = vmatprep.subr.mxu0 0.0
  %78 = vmatpush1.msra.mxu0 0.0
  %79 = vmatprep.subr.mxu0 0.0
  %80 = vmatpush1.msra.mxu0 0.0
  %81 = vmatprep.subr.mxu0 0.0
  %82 = vmatpush1.msra.mxu0 0.0
  %83 = vmatprep.subr.mxu0 0.0
  %84 = vmatpush1.msra.mxu0 0.0
  %85 = vmatprep.subr.mxu0 0.0
  %86 = vmatpush1.msra.mxu0 0.0
  %87 = vmatprep.subr.mxu0 0.0
  %88 = vmatpush1.msra.mxu0 0.0
  %89 = vmatprep.subr.mxu0 0.0
  %90 = vmatpush1.msra.mxu0 0.0
  %91 = vmatprep.subr.mxu0 0.0
  %92 = vmatpush1.msra.mxu0 0.0
  %93 = vmatprep.subr.mxu0 0.0
  %94 = vmatpush1.msra.mxu0 0.0
  %95 = vmatprep.subr.mxu0 0.0
  %96 = vmatpush1.msra.mxu0 0.0
  %97 = vmatprep.subr.mxu0 0.0
  %98 = vmatpush1.msra.mxu0 0.0
  %99 = vmatprep.subr.mxu0 0.0
  %100 = vmatpush1.msra.mxu0 0.0
  %101 = vmatprep.subr.mxu0 0.0
  %102 = vmatpush1.msra.mxu0 0.0
  %103 = vmatprep.subr.mxu0 0.0
  %104 = vmatpush1.msra.mxu0 %v60
  %105 = vmatprep.subr.mxu0 0.0
  %106 = vmatpush1.msra.mxu0 %v59
  %107 = vmatprep.subr.mxu0 0.0
  %108 = vmatpush2.msra.mxu0 0.0
  %109 = vmatprep.subr.mxu0 0.0
  %110 = vmatpush2.msra.mxu0 0.0
  %111 = vmatprep.subr.mxu0 0.0
  %112 = vmatpush2.msra.mxu0 0.0
  %113 = vmatprep.subr.mxu0 0.0
  %114 = vmatpush2.msra.mxu0 0.0
  %115 = vmatprep.subr.mxu0 0.0
  %116 = vmatpush2.msra.mxu0 0.0
  %117 = vmatprep.subr.mxu0 0.0
  %118 = vmatpush2.msra.mxu0 0.0
  %119 = vmatprep.subr.mxu0 0.0
  %120 = vmatpush2.msra.mxu0 0.0
  %121 = vmatprep.subr.mxu0 0.0
  %122 = vmatpush2.msra.mxu0 0.0
  %123 = vmatprep.subr.mxu0 0.0
  %124 = vmatpush2.msra.mxu0 0.0
  %125 = vmatprep.subr.mxu0 0.0
  %126 = vmatpush2.msra.mxu0 0.0
  %127 = vmatprep.subr.mxu0 0.0
  %128 = vmatpush2.msra.mxu0 0.0
  %129 = vmatprep.subr.mxu0 0.0
  %130 = vmatpush2.msra.mxu0 0.0
  %131 = vmatprep.subr.mxu0 0.0
  %132 = vmatpush2.msra.mxu0 0.0
  %133 = vmatprep.subr.mxu0 0.0
  %134 = vmatpush2.msra.mxu0 0.0
  %135 = vmatprep.subr.mxu0 0.0
  %136 = vmatpush2.msra.mxu0 0.0
  %137 = vmatprep.subr.mxu0 0.0
  %138 = vmatpush2.msra.mxu0 0.0
  %139 = vmatprep.mubr.f32.mxu0 0.0
  %140 = vmatmul.mubr.f32.gmra.mxu0 %v70
  %v141 = vpop.f32.mrf.mxu0
  %v142 = vadd.f32 %v66, %v141
  %v143 = vpop.f32.mrf.mxu0
  %144 = vmatprep.mubr.f32.mxu0 0.0
  %145 = vmatmul.mubr.f32.gmra.mxu0 %v73
  %v146 = vpop.f32.mrf.mxu0
  %v147 = vadd.f32 %v66, %v146
  %v148 = vpop.f32.mrf.mxu0
  %149 = vdwg.mxu0
  %v150 = vmax.f32 %v142, 0.0
  %v151 = vmax.f32 %v147, 0.0
  %v152 = vld [vmem:[%s9] sm:$0xf]
  %v153 = vld [vmem:[%s6] sm:$0xff]
  %v154 = vld [vmem:[%s6 + $0x8] sm:$0xff]
  %v156 = vsel %vm68, %v150, 0
  %v159 = vsel %vm68, %v151, 0
  %161 = vmatprep.subr.mxu0 0.0
  %162 = vmatpush1.msra.mxu0 0.0
  %163 = vmatprep.subr.mxu0 0.0
  %164 = vmatpush1.msra.mxu0 0.0
  %165 = vmatprep.subr.mxu0 0.0
  %166 = vmatpush1.msra.mxu0 0.0
  %167 = vmatprep.subr.mxu0 0.0
  %168 = vmatpush1.msra.mxu0 0.0
  %169 = vmatprep.subr.mxu0 0.0
  %170 = vmatpush1.msra.mxu0 0.0
  %171 = vmatprep.subr.mxu0 0.0
  %172 = vmatpush1.msra.mxu0 0.0
  %173 = vmatprep.subr.mxu0 0.0
  %174 = vmatpush1.msra.mxu0 0.0
  %175 = vmatprep.subr.mxu0 0.0
  %176 = vmatpush1.msra.mxu0 0.0
  %177 = vmatprep.subr.mxu0 0.0
  %178 = vmatpush1.msra.mxu0 0.0
  %179 = vmatprep.subr.mxu0 0.0
  %180 = vmatpush1.msra.mxu0 0.0
  %181 = vmatprep.subr.mxu0 0.0
  %182 = vmatpush1.msra.mxu0 0.0
  %183 = vmatprep.subr.mxu0 0.0
  %184 = vmatpush1.msra.mxu0 0.0
  %185 = vmatprep.subr.mxu0 0.0
  %186 = vmatpush1.msra.mxu0 0.0
  %187 = vmatprep.subr.mxu0 0.0
  %188 = vmatpush1.msra.mxu0 0.0
  %189 = vmatprep.subr.mxu0 0.0
  %190 = vmatpush1.msra.mxu0 %v154
  %191 = vmatprep.subr.mxu0 0.0
  %192 = vmatpush1.msra.mxu0 %v153
  %193 = vmatprep.subr.mxu0 0.0
  %194 = vmatpush2.msra.mxu0 0.0
  %195 = vmatprep.subr.mxu0 0.0
  %196 = vmatpush2.msra.mxu0 0.0
  %197 = vmatprep.subr.mxu0 0.0
  %198 = vmatpush2.msra.mxu0 0.0
  %199 = vmatprep.subr.mxu0 0.0
  %200 = vmatpush2.msra.mxu0 0.0
  %201 = vmatprep.subr.mxu0 0.0
  %202 = vmatpush2.msra.mxu0 0.0
  %203 = vmatprep.subr.mxu0 0.0
  %204 = vmatpush2.msra.mxu0 0.0
  %205 = vmatprep.subr.mxu0 0.0
  %206 = vmatpush2.msra.mxu0 0.0
  %207 = vmatprep.subr.mxu0 0.0
  %208 = vmatpush2.msra.mxu0 0.0
  %209 = vmatprep.subr.mxu0 0.0
  %210 = vmatpush2.msra.mxu0 0.0
  %211 = vmatprep.subr.mxu0 0.0
  %212 = vmatpush2.msra.mxu0 0.0
  %213 = vmatprep.subr.mxu0 0.0
  %214 = vmatpush2.msra.mxu0 0.0
  %215 = vmatprep.subr.mxu0 0.0
  %216 = vmatpush2.msra.mxu0 0.0
  %217 = vmatprep.subr.mxu0 0.0
  %218 = vmatpush2.msra.mxu0 0.0
  %219 = vmatprep.subr.mxu0 0.0
  %220 = vmatpush2.msra.mxu0 0.0
  %221 = vmatprep.subr.mxu0 0.0
  %222 = vmatpush2.msra.mxu0 0.0
  %223 = vmatprep.subr.mxu0 0.0
  %224 = vmatpush2.msra.mxu0 0.0
  %225 = vmatprep.mubr.f32.mxu0 0.0
  %226 = vmatmul.mubr.f32.gmra.mxu0 %v156
  %v227 = vpop.f32.mrf.mxu0
  %v228 = vadd.f32 0.0, %v227
  %v229 = vpop.f32.mrf.mxu0
  %230 = vmatprep.mubr.f32.mxu0 0.0
  %231 = vmatmul.mubr.f32.gmra.mxu0 %v159
  %v232 = vpop.f32.mrf.mxu0
  %v233 = vadd.f32 0.0, %v232
  %v234 = vpop.f32.mrf.mxu0
  %235 = vdwg.mxu0
  %v236 = vld [vmem:[%s7] sm:$0x3]
  %v238 = vsel %vm68, %v236, 0
  %v241 = vsel %vm68, %v228, 0
  %v244 = vsel %vm68, %v233, 0
  %246 = vmatprep.subr.mxu0 0.0
  %247 = vmatpush1.xpose.msra.mxu0 0.0
  %248 = vmatprep.subr.mxu0 0.0
  %249 = vmatpush1.xpose.msra.mxu0 0.0
  %250 = vmatprep.subr.mxu0 0.0
  %251 = vmatpush1.xpose.msra.mxu0 0.0
  %252 = vmatprep.subr.mxu0 0.0
  %253 = vmatpush1.xpose.msra.mxu0 0.0
  %254 = vmatprep.subr.mxu0 0.0
  %255 = vmatpush1.xpose.msra.mxu0 0.0
  %256 = vmatprep.subr.mxu0 0.0
  %257 = vmatpush1.xpose.msra.mxu0 0.0
  %258 = vmatprep.subr.mxu0 0.0
  %259 = vmatpush1.xpose.msra.mxu0 0.0
  %260 = vmatprep.subr.mxu0 0.0
  %261 = vmatpush1.xpose.msra.mxu0 0.0
  %262 = vmatprep.subr.mxu0 0.0
  %263 = vmatpush1.xpose.msra.mxu0 0.0
  %264 = vmatprep.subr.mxu0 0.0
  %265 = vmatpush1.xpose.msra.mxu0 0.0
  %266 = vmatprep.subr.mxu0 0.0
  %267 = vmatpush1.xpose.msra.mxu0 0.0
  %268 = vmatprep.subr.mxu0 0.0
  %269 = vmatpush1.xpose.msra.mxu0 0.0
  %270 = vmatprep.subr.mxu0 0.0
  %271 = vmatpush1.xpose.msra.mxu0 0.0
  %272 = vmatprep.subr.mxu0 0.0
  %273 = vmatpush1.xpose.msra.mxu0 0.0
  %274 = vmatprep.subr.mxu0 0.0
  %275 = vmatpush1.xpose.msra.mxu0 %v244
  %276 = vmatprep.subr.mxu0 0.0
  %277 = vmatpush1.xpose.msra.mxu0 %v241
  %278 = vmatprep.subr.mxu0 0.0
  %279 = vmatpush2.xpose.msra.mxu0 0.0
  %280 = vmatprep.subr.mxu0 0.0
  %281 = vmatpush2.xpose.msra.mxu0 0.0
  %282 = vmatprep.subr.mxu0 0.0
  %283 = vmatpush2.xpose.msra.mxu0 0.0
  %284 = vmatprep.subr.mxu0 0.0
  %285 = vmatpush2.xpose.msra.mxu0 0.0
  %286 = vmatprep.subr.mxu0 0.0
  %287 = vmatpush2.xpose.msra.mxu0 0.0
  %288 = vmatprep.subr.mxu0 0.0
  %289 = vmatpush2.xpose.msra.mxu0 0.0
  %290 = vmatprep.subr.mxu0 0.0
  %291 = vmatpush2.xpose.msra.mxu0 0.0
  %292 = vmatprep.subr.mxu0 0.0
  %293 = vmatpush2.xpose.msra.mxu0 0.0
  %294 = vmatprep.subr.mxu0 0.0
  %295 = vmatpush2.xpose.msra.mxu0 0.0
  %296 = vmatprep.subr.mxu0 0.0
  %297 = vmatpush2.xpose.msra.mxu0 0.0
  %298 = vmatprep.subr.mxu0 0.0
  %299 = vmatpush2.xpose.msra.mxu0 0.0
  %300 = vmatprep.subr.mxu0 0.0
  %301 = vmatpush2.xpose.msra.mxu0 0.0
  %302 = vmatprep.subr.mxu0 0.0
  %303 = vmatpush2.xpose.msra.mxu0 0.0
  %304 = vmatprep.subr.mxu0 0.0
  %305 = vmatpush2.xpose.msra.mxu0 0.0
  %306 = vmatprep.subr.mxu0 0.0
  %307 = vmatpush2.xpose.msra.mxu0 0.0
  %308 = vmatprep.subr.mxu0 0.0
  %309 = vmatpush2.xpose.msra.mxu0 0.0
  %310 = vmatprep.mubr.f32.mxu0 0.0
  %311 = vmatmul.mubr.f32.gmra.mxu0 %v238
  %v312 = vpop.f32.mrf.mxu0
  %v313 = vadd.f32 0.0, %v312
  %v314 = vpop.f32.mrf.mxu0
  %315 = vdwg.mxu0
  %v316 = vld [vmem:[%s8] sm:$0x3]
  %317 = vrot.lane.b32.xlu0 %v228, 112
  %v318 = vpop.permute.xlu0 %317
  %319 = vrot.lane.b32.xlu0 %v233, 112
  %v320 = vpop.permute.xlu0 %319
  %v322 = vsel %vm68, %v316, 0
  %v324 = vsel %vm68, %v318, 0
  %v326 = vsel %vm68, %v320, 0
  %328 = vmatprep.subr.mxu0 0.0
  %329 = vmatpush1.xpose.msra.mxu0 0.0
  %330 = vmatprep.subr.mxu0 0.0
  %331 = vmatpush1.xpose.msra.mxu0 0.0
  %332 = vmatprep.subr.mxu0 0.0
  %333 = vmatpush1.xpose.msra.mxu0 0.0
  %334 = vmatprep.subr.mxu0 0.0
  %335 = vmatpush1.xpose.msra.mxu0 0.0
  %336 = vmatprep.subr.mxu0 0.0
  %337 = vmatpush1.xpose.msra.mxu0 0.0
  %338 = vmatprep.subr.mxu0 0.0
  %339 = vmatpush1.xpose.msra.mxu0 0.0
  %340 = vmatprep.subr.mxu0 0.0
  %341 = vmatpush1.xpose.msra.mxu0 0.0
  %342 = vmatprep.subr.mxu0 0.0
  %343 = vmatpush1.xpose.msra.mxu0 0.0
  %344 = vmatprep.subr.mxu0 0.0
  %345 = vmatpush1.xpose.msra.mxu0 0.0
  %346 = vmatprep.subr.mxu0 0.0
  %347 = vmatpush1.xpose.msra.mxu0 0.0
  %348 = vmatprep.subr.mxu0 0.0
  %349 = vmatpush1.xpose.msra.mxu0 0.0
  %350 = vmatprep.subr.mxu0 0.0
  %351 = vmatpush1.xpose.msra.mxu0 0.0
  %352 = vmatprep.subr.mxu0 0.0
  %353 = vmatpush1.xpose.msra.mxu0 0.0
  %354 = vmatprep.subr.mxu0 0.0
  %355 = vmatpush1.xpose.msra.mxu0 0.0
  %356 = vmatprep.subr.mxu0 0.0
  %357 = vmatpush1.xpose.msra.mxu0 %v326
  %358 = vmatprep.subr.mxu0 0.0
  %359 = vmatpush1.xpose.msra.mxu0 %v324
  %360 = vmatprep.subr.mxu0 0.0
  %361 = vmatpush2.xpose.msra.mxu0 0.0
  %362 = vmatprep.subr.mxu0 0.0
  %363 = vmatpush2.xpose.msra.mxu0 0.0
  %364 = vmatprep.subr.mxu0 0.0
  %365 = vmatpush2.xpose.msra.mxu0 0.0
  %366 = vmatprep.subr.mxu0 0.0
  %367 = vmatpush2.xpose.msra.mxu0 0.0
  %368 = vmatprep.subr.mxu0 0.0
  %369 = vmatpush2.xpose.msra.mxu0 0.0
  %370 = vmatprep.subr.mxu0 0.0
  %371 = vmatpush2.xpose.msra.mxu0 0.0
  %372 = vmatprep.subr.mxu0 0.0
  %373 = vmatpush2.xpose.msra.mxu0 0.0
  %374 = vmatprep.subr.mxu0 0.0
  %375 = vmatpush2.xpose.msra.mxu0 0.0
  %376 = vmatprep.subr.mxu0 0.0
  %377 = vmatpush2.xpose.msra.mxu0 0.0
  %378 = vmatprep.subr.mxu0 0.0
  %379 = vmatpush2.xpose.msra.mxu0 0.0
  %380 = vmatprep.subr.mxu0 0.0
  %381 = vmatpush2.xpose.msra.mxu0 0.0
  %382 = vmatprep.subr.mxu0 0.0
  %383 = vmatpush2.xpose.msra.mxu0 0.0
  %384 = vmatprep.subr.mxu0 0.0
  %385 = vmatpush2.xpose.msra.mxu0 0.0
  %386 = vmatprep.subr.mxu0 0.0
  %387 = vmatpush2.xpose.msra.mxu0 0.0
  %388 = vmatprep.subr.mxu0 0.0
  %389 = vmatpush2.xpose.msra.mxu0 0.0
  %390 = vmatprep.subr.mxu0 0.0
  %391 = vmatpush2.xpose.msra.mxu0 0.0
  %392 = vmatprep.mubr.f32.mxu0 0.0
  %393 = vmatmul.mubr.f32.gmra.mxu0 %v322
  %v394 = vpop.f32.mrf.mxu0
  %v395 = vadd.f32 0.0, %v394
  %v396 = vpop.f32.mrf.mxu0
  %397 = vdwg.mxu0
  %v398 = vlaneseq
  %v399 = vshrl.u32 %v398, 7
  %v400 = vsub.s32 0, %v399
  %v401 = vrot.slane %v395, %v400
  %403 = vbcast.lane.b32.xlu0 %v401, 256
  %v404 = vpop.permute.xlu0 %403
  %s406 = sor.u32 256, 8
  %407 = vbcast.lane.b32.xlu0 %v401, %s406
  %v408 = vpop.permute.xlu0 %407
  %v409 = vlaneseq
  %v410 = vshrl.u32 %v409, 7
  %v411 = vsub.s32 1, %v410
  %v412 = vrot.slane %v395, %v411
  %414 = vbcast.lane.b32.xlu0 %v412, 256
  %v415 = vpop.permute.xlu0 %414
  %s417 = sor.u32 256, 8
  %418 = vbcast.lane.b32.xlu0 %v412, %s417
  %v419 = vpop.permute.xlu0 %418
  %v422 = vunpack.c.l.s4 1966171168
  %v423 = vunpack.c.0.s8 %v422
  %v424 = vlaneseq
  %v425 = vshrl.u32 %v424, 7
  %v426 = vsub.s32 %v423, %v425
  %v427 = vrot.slane %v313, %v426
  %v428 = vcombine.high %v427, %v427
  %v430 = vunpack.c.l.s4 1966171168
  %v431 = vunpack.c.0.s8 %v430
  %v432 = vlaneseq
  %v433 = vshrl.u32 %v432, 7
  %v434 = vsub.s32 %v431, %v433
  %v435 = vrot.slane %v427, %v434
  %v437 = vunpack.c.l.s4 1966171168
  %v438 = vunpack.c.0.s8 %v437
  %v439 = vlaneseq
  %v440 = vshrl.u32 %v439, 7
  %v441 = vsub.s32 %v438, %v440
  %v442 = vrot.slane %v428, %v441
  %v443 = vlaneseq
  %v444 = vshrl.u32 %v443, 7
  %v445 = vsub.s32 0, %v444
  %v446 = vrot.slane %v435, %v445
  %v447 = vlaneseq
  %v448 = vshrl.u32 %v447, 7
  %v449 = vsub.s32 0, %v448
  %v450 = vrot.slane %v442, %v449
  %v453 = vadd.f32 %v404, %v446
  %v454 = vadd.f32 %v408, %v446
  %v455 = vadd.f32 %v415, %v450
  %v456 = vadd.f32 %v419, %v450
  %v457 = vmul.f32 %v453, 0.2
  %v458 = vmul.f32 %v454, 0.2
  %v459 = vmul.f32 %v455, 0.2
  %v460 = vmul.f32 %v456, 0.2
  %v461 = vmax.f32 %v453, %v457
  %v462 = vmax.f32 %v454, %v458
  %v463 = vmax.f32 %v455, %v459
  %v464 = vmax.f32 %v456, %v460
  %v465 = vadd.f32 %v461, %v54
  %v466 = vadd.f32 %v462, %v55
  %v467 = vadd.f32 %v463, %v54
  %v468 = vadd.f32 %v464, %v55
  %v469 = vsel %vm68, %v465, -inf
  %470 = vmax.xlane.f32.xlu0 %v469
  %v471 = vpop.xlane.xlu0 %470
  %v472 = vsel %vm68, %v466, -inf
  %473 = vmax.xlane.f32.xlu0 %v472
  %v474 = vpop.xlane.xlu0 %473
  %v475 = vsel %vm68, %v467, -inf
  %476 = vmax.xlane.f32.xlu0 %v475
  %v477 = vpop.xlane.xlu0 %476
  %v478 = vsel %vm68, %v468, -inf
  %479 = vmax.xlane.f32.xlu0 %v478
  %v480 = vpop.xlane.xlu0 %479
  %v481 = vsub.f32 %v465, %v471
  %v482 = vsub.f32 %v466, %v474
  %v483 = vsub.f32 %v467, %v477
  %v484 = vsub.f32 %v468, %v480
  %v485 = vmul.f32 %v481, 1.442695
  %v486 = vpow.pop %v485
  %v487 = vmul.f32 %v482, 1.442695
  %v488 = vpow.pop %v487
  %v489 = vmul.f32 %v483, 1.442695
  %v490 = vpow.pop %v489
  %v491 = vmul.f32 %v484, 1.442695
  %v492 = vpow.pop %v491
  %v493 = vsel %vm68, %v486, 0.0
  %494 = vadd.xlane.f32.xlu0 %v493
  %v495 = vpop.xlane.xlu0 %494
  %v496 = vsel %vm68, %v488, 0.0
  %497 = vadd.xlane.f32.xlu0 %v496
  %v498 = vpop.xlane.xlu0 %497
  %v499 = vsel %vm68, %v490, 0.0
  %500 = vadd.xlane.f32.xlu0 %v499
  %v501 = vpop.xlane.xlu0 %500
  %v502 = vsel %vm68, %v492, 0.0
  %503 = vadd.xlane.f32.xlu0 %v502
  %v504 = vpop.xlane.xlu0 %503
  %v505 = vrcp.pop %v495
  %v506 = vrcp.pop %v498
  %v507 = vrcp.pop %v501
  %v508 = vrcp.pop %v504
  %v509 = vmul.f32 %v486, %v505
  %v510 = vmul.f32 %v488, %v506
  %v511 = vmul.f32 %v490, %v507
  %v512 = vmul.f32 %v492, %v508
  %v514 = vsel %vm68, %v509, 0
  %v517 = vsel %vm68, %v510, 0
  %519 = vmatprep.subr.mxu0 0.0
  %520 = vmatpush1.msra.mxu0 0.0
  %521 = vmatprep.subr.mxu0 0.0
  %522 = vmatpush1.msra.mxu0 0.0
  %523 = vmatprep.subr.mxu0 0.0
  %524 = vmatpush1.msra.mxu0 0.0
  %525 = vmatprep.subr.mxu0 0.0
  %526 = vmatpush1.msra.mxu0 0.0
  %527 = vmatprep.subr.mxu0 0.0
  %528 = vmatpush1.msra.mxu0 0.0
  %529 = vmatprep.subr.mxu0 0.0
  %530 = vmatpush1.msra.mxu0 0.0
  %531 = vmatprep.subr.mxu0 0.0
  %532 = vmatpush1.msra.mxu0 0.0
  %533 = vmatprep.subr.mxu0 0.0
  %534 = vmatpush1.msra.mxu0 0.0
  %535 = vmatprep.subr.mxu0 0.0
  %536 = vmatpush1.msra.mxu0 0.0
  %537 = vmatprep.subr.mxu0 0.0
  %538 = vmatpush1.msra.mxu0 0.0
  %539 = vmatprep.subr.mxu0 0.0
  %540 = vmatpush1.msra.mxu0 0.0
  %541 = vmatprep.subr.mxu0 0.0
  %542 = vmatpush1.msra.mxu0 0.0
  %543 = vmatprep.subr.mxu0 0.0
  %544 = vmatpush1.msra.mxu0 0.0
  %545 = vmatprep.subr.mxu0 0.0
  %546 = vmatpush1.msra.mxu0 0.0
  %547 = vmatprep.subr.mxu0 0.0
  %548 = vmatpush1.msra.mxu0 %v233
  %549 = vmatprep.subr.mxu0 0.0
  %550 = vmatpush1.msra.mxu0 %v228
  %551 = vmatprep.subr.mxu0 0.0
  %552 = vmatpush2.msra.mxu0 0.0
  %553 = vmatprep.subr.mxu0 0.0
  %554 = vmatpush2.msra.mxu0 0.0
  %555 = vmatprep.subr.mxu0 0.0
  %556 = vmatpush2.msra.mxu0 0.0
  %557 = vmatprep.subr.mxu0 0.0
  %558 = vmatpush2.msra.mxu0 0.0
  %559 = vmatprep.subr.mxu0 0.0
  %560 = vmatpush2.msra.mxu0 0.0
  %561 = vmatprep.subr.mxu0 0.0
  %562 = vmatpush2.msra.mxu0 0.0
  %563 = vmatprep.subr.mxu0 0.0
  %564 = vmatpush2.msra.mxu0 0.0
  %565 = vmatprep.subr.mxu0 0.0
  %566 = vmatpush2.msra.mxu0 0.0
  %567 = vmatprep.subr.mxu0 0.0
  %568 = vmatpush2.msra.mxu0 0.0
  %569 = vmatprep.subr.mxu0 0.0
  %570 = vmatpush2.msra.mxu0 0.0
  %571 = vmatprep.subr.mxu0 0.0
  %572 = vmatpush2.msra.mxu0 0.0
  %573 = vmatprep.subr.mxu0 0.0
  %574 = vmatpush2.msra.mxu0 0.0
  %575 = vmatprep.subr.mxu0 0.0
  %576 = vmatpush2.msra.mxu0 0.0
  %577 = vmatprep.subr.mxu0 0.0
  %578 = vmatpush2.msra.mxu0 0.0
  %579 = vmatprep.subr.mxu0 0.0
  %580 = vmatpush2.msra.mxu0 0.0
  %581 = vmatprep.subr.mxu0 0.0
  %582 = vmatpush2.msra.mxu0 0.0
  %583 = vmatprep.mubr.f32.mxu0 0.0
  %584 = vmatmul.mubr.f32.gmra.mxu0 %v514
  %v585 = vpop.f32.mrf.mxu0
  %v586 = vadd.f32 0.0, %v585
  %v587 = vpop.f32.mrf.mxu0
  %588 = vmatprep.mubr.f32.mxu0 0.0
  %589 = vmatmul.mubr.f32.gmra.mxu0 %v517
  %v590 = vpop.f32.mrf.mxu0
  %v591 = vadd.f32 0.0, %v590
  %v592 = vpop.f32.mrf.mxu0
  %593 = vdwg.mxu0
  %594 = vrot.lane.b32.xlu0 %v228, 120
  %v595 = vpop.permute.xlu0 %594
  %596 = vrot.lane.b32.xlu0 %v233, 120
  %v597 = vpop.permute.xlu0 %596
  %v601 = vsel %vm68, %v511, 0
  %v604 = vsel %vm68, %v512, 0
  %606 = vmatprep.subr.mxu0 0.0
  %607 = vmatpush1.msra.mxu0 0.0
  %608 = vmatprep.subr.mxu0 0.0
  %609 = vmatpush1.msra.mxu0 0.0
  %610 = vmatprep.subr.mxu0 0.0
  %611 = vmatpush1.msra.mxu0 0.0
  %612 = vmatprep.subr.mxu0 0.0
  %613 = vmatpush1.msra.mxu0 0.0
  %614 = vmatprep.subr.mxu0 0.0
  %615 = vmatpush1.msra.mxu0 0.0
  %616 = vmatprep.subr.mxu0 0.0
  %617 = vmatpush1.msra.mxu0 0.0
  %618 = vmatprep.subr.mxu0 0.0
  %619 = vmatpush1.msra.mxu0 0.0
  %620 = vmatprep.subr.mxu0 0.0
  %621 = vmatpush1.msra.mxu0 0.0
  %622 = vmatprep.subr.mxu0 0.0
  %623 = vmatpush1.msra.mxu0 0.0
  %624 = vmatprep.subr.mxu0 0.0
  %625 = vmatpush1.msra.mxu0 0.0
  %626 = vmatprep.subr.mxu0 0.0
  %627 = vmatpush1.msra.mxu0 0.0
  %628 = vmatprep.subr.mxu0 0.0
  %629 = vmatpush1.msra.mxu0 0.0
  %630 = vmatprep.subr.mxu0 0.0
  %631 = vmatpush1.msra.mxu0 0.0
  %632 = vmatprep.subr.mxu0 0.0
  %633 = vmatpush1.msra.mxu0 0.0
  %634 = vmatprep.subr.mxu0 0.0
  %635 = vmatpush1.msra.mxu0 %v597
  %636 = vmatprep.subr.mxu0 0.0
  %637 = vmatpush1.msra.mxu0 %v595
  %638 = vmatprep.subr.mxu0 0.0
  %639 = vmatpush2.msra.mxu0 0.0
  %640 = vmatprep.subr.mxu0 0.0
  %641 = vmatpush2.msra.mxu0 0.0
  %642 = vmatprep.subr.mxu0 0.0
  %643 = vmatpush2.msra.mxu0 0.0
  %644 = vmatprep.subr.mxu0 0.0
  %645 = vmatpush2.msra.mxu0 0.0
  %646 = vmatprep.subr.mxu0 0.0
  %647 = vmatpush2.msra.mxu0 0.0
  %648 = vmatprep.subr.mxu0 0.0
  %649 = vmatpush2.msra.mxu0 0.0
  %650 = vmatprep.subr.mxu0 0.0
  %651 = vmatpush2.msra.mxu0 0.0
  %652 = vmatprep.subr.mxu0 0.0
  %653 = vmatpush2.msra.mxu0 0.0
  %654 = vmatprep.subr.mxu0 0.0
  %655 = vmatpush2.msra.mxu0 0.0
  %656 = vmatprep.subr.mxu0 0.0
  %657 = vmatpush2.msra.mxu0 0.0
  %658 = vmatprep.subr.mxu0 0.0
  %659 = vmatpush2.msra.mxu0 0.0
  %660 = vmatprep.subr.mxu0 0.0
  %661 = vmatpush2.msra.mxu0 0.0
  %662 = vmatprep.subr.mxu0 0.0
  %663 = vmatpush2.msra.mxu0 0.0
  %664 = vmatprep.subr.mxu0 0.0
  %665 = vmatpush2.msra.mxu0 0.0
  %666 = vmatprep.subr.mxu0 0.0
  %667 = vmatpush2.msra.mxu0 0.0
  %668 = vmatprep.subr.mxu0 0.0
  %669 = vmatpush2.msra.mxu0 0.0
  %670 = vmatprep.mubr.f32.mxu0 0.0
  %671 = vmatmul.mubr.f32.gmra.mxu0 %v601
  %v672 = vpop.f32.mrf.mxu0
  %v673 = vadd.f32 0.0, %v672
  %v674 = vpop.f32.mrf.mxu0
  %675 = vmatprep.mubr.f32.mxu0 0.0
  %676 = vmatmul.mubr.f32.gmra.mxu0 %v604
  %v677 = vpop.f32.mrf.mxu0
  %v678 = vadd.f32 0.0, %v677
  %v679 = vpop.f32.mrf.mxu0
  %680 = vdwg.mxu0
  %683 = vrot.lane.b32.xlu0 %v673, 8
  %v684 = vpop.permute.xlu0 %683
  %685 = vrot.lane.b32.xlu0 %v678, 8
  %v686 = vpop.permute.xlu0 %685
  %vm689 = vcmask 64512
  %v690 = vsel %vm689, %v586, %v684
  %v691 = vsel %vm689, %v591, %v686
  %v692 = vlaneseq
  %v693 = vshrl.u32 %v692, 7
  %v694 = vsub.s32 0, %v693
  %v695 = vrot.slane %v152, %v694
  %v696 = vadd.f32 %v690, %v695
  %v697 = vadd.f32 %v691, %v695
  %v698 = vsel %vm68, %v696, 0.0
  %699 = vadd.xlane.f32.xlu0 %v698
  %v700 = vpop.xlane.xlu0 %699
  %v701 = vsel %vm68, %v697, 0.0
  %702 = vadd.xlane.f32.xlu0 %v701
  %v703 = vpop.xlane.xlu0 %702
  %v704 = vrcp.pop 16.0
  %v705 = vmul.f32 %v700, %v704
  %v706 = vmul.f32 %v703, %v704
  %v707 = vsub.f32 %v696, %v705
  %v708 = vsub.f32 %v697, %v706
  %v709 = vmul.f32 %v707, %v707
  %v710 = vmul.f32 %v708, %v708
  %v711 = vsel %vm68, %v709, 0.0
  %712 = vadd.xlane.f32.xlu0 %v711
  %v713 = vpop.xlane.xlu0 %712
  %v714 = vsel %vm68, %v710, 0.0
  %715 = vadd.xlane.f32.xlu0 %v714
  %v716 = vpop.xlane.xlu0 %715
  %v717 = vmul.f32 %v713, %v704
  %v718 = vmul.f32 %v716, %v704
  %v719 = vadd.f32 %v717, 1e-05
  %v720 = vadd.f32 %v718, 1e-05
  %v721 = vrsqrt.pop %v719
  %v722 = vrsqrt.pop %v720
  %v723 = vmul.f32 %v707, %v721
  %v724 = vmul.f32 %v708, %v722
  %v725 = vlaneseq
  %v726 = vshrl.u32 %v725, 7
  %v727 = vsub.s32 1, %v726
  %v728 = vrot.slane %v152, %v727
  %v729 = vmul.f32 %v723, %v728
  %v730 = vmul.f32 %v724, %v728
  %v731 = vlaneseq
  %v732 = vshrl.u32 %v731, 7
  %v733 = vsub.s32 2, %v732
  %v734 = vrot.slane %v152, %v733
  %v735 = vadd.f32 %v729, %v734
  %v736 = vadd.f32 %v730, %v734
  %vm737 = vcmp.gt.f32.partialorder %v735, 0.0
  %vm738 = vcmp.gt.f32.partialorder %v736, 0.0
  %v739 = vlaneseq
  %v740 = vshrl.u32 %v739, 7
  %v741 = vsub.s32 3, %v740
  %v742 = vrot.slane %v152, %v741
  %v743 = vmul.f32 %v742, %v735
  %v744 = vmul.f32 %v742, %v736
  %v745 = vsel %vm737, %v735, %v743
  %v746 = vsel %vm738, %v736, %v744
  %v747 = vadd.f32 %v745, %v150
  %v748 = vadd.f32 %v746, %v151
  %s749 = scalar_lea.vmem %s9, 4
  %v750 = vld [vmem:[%s749] sm:$0xf]
  %s751 = scalar_lea.vmem %s6, 16
  %v752 = vld [vmem:[%s751] sm:$0xff]
  %v753 = vld [vmem:[%s751 + $0x8] sm:$0xff]
  %v755 = vsel %vm68, %v747, 0
  %v758 = vsel %vm68, %v748, 0
  %760 = vmatprep.subr.mxu0 0.0
  %761 = vmatpush1.msra.mxu0 0.0
  %762 = vmatprep.subr.mxu0 0.0
  %763 = vmatpush1.msra.mxu0 0.0
  %764 = vmatprep.subr.mxu0 0.0
  %765 = vmatpush1.msra.mxu0 0.0
  %766 = vmatprep.subr.mxu0 0.0
  %767 = vmatpush1.msra.mxu0 0.0
  %768 = vmatprep.subr.mxu0 0.0
  %769 = vmatpush1.msra.mxu0 0.0
  %770 = vmatprep.subr.mxu0 0.0
  %771 = vmatpush1.msra.mxu0 0.0
  %772 = vmatprep.subr.mxu0 0.0
  %773 = vmatpush1.msra.mxu0 0.0
  %774 = vmatprep.subr.mxu0 0.0
  %775 = vmatpush1.msra.mxu0 0.0
  %776 = vmatprep.subr.mxu0 0.0
  %777 = vmatpush1.msra.mxu0 0.0
  %778 = vmatprep.subr.mxu0 0.0
  %779 = vmatpush1.msra.mxu0 0.0
  %780 = vmatprep.subr.mxu0 0.0
  %781 = vmatpush1.msra.mxu0 0.0
  %782 = vmatprep.subr.mxu0 0.0
  %783 = vmatpush1.msra.mxu0 0.0
  %784 = vmatprep.subr.mxu0 0.0
  %785 = vmatpush1.msra.mxu0 0.0
  %786 = vmatprep.subr.mxu0 0.0
  %787 = vmatpush1.msra.mxu0 0.0
  %788 = vmatprep.subr.mxu0 0.0
  %789 = vmatpush1.msra.mxu0 %v753
  %790 = vmatprep.subr.mxu0 0.0
  %791 = vmatpush1.msra.mxu0 %v752
  %792 = vmatprep.subr.mxu0 0.0
  %793 = vmatpush2.msra.mxu0 0.0
  %794 = vmatprep.subr.mxu0 0.0
  %795 = vmatpush2.msra.mxu0 0.0
  %796 = vmatprep.subr.mxu0 0.0
  %797 = vmatpush2.msra.mxu0 0.0
  %798 = vmatprep.subr.mxu0 0.0
  %799 = vmatpush2.msra.mxu0 0.0
  %800 = vmatprep.subr.mxu0 0.0
  %801 = vmatpush2.msra.mxu0 0.0
  %802 = vmatprep.subr.mxu0 0.0
  %803 = vmatpush2.msra.mxu0 0.0
  %804 = vmatprep.subr.mxu0 0.0
  %805 = vmatpush2.msra.mxu0 0.0
  %806 = vmatprep.subr.mxu0 0.0
  %807 = vmatpush2.msra.mxu0 0.0
  %808 = vmatprep.subr.mxu0 0.0
  %809 = vmatpush2.msra.mxu0 0.0
  %810 = vmatprep.subr.mxu0 0.0
  %811 = vmatpush2.msra.mxu0 0.0
  %812 = vmatprep.subr.mxu0 0.0
  %813 = vmatpush2.msra.mxu0 0.0
  %814 = vmatprep.subr.mxu0 0.0
  %815 = vmatpush2.msra.mxu0 0.0
  %816 = vmatprep.subr.mxu0 0.0
  %817 = vmatpush2.msra.mxu0 0.0
  %818 = vmatprep.subr.mxu0 0.0
  %819 = vmatpush2.msra.mxu0 0.0
  %820 = vmatprep.subr.mxu0 0.0
  %821 = vmatpush2.msra.mxu0 0.0
  %822 = vmatprep.subr.mxu0 0.0
  %823 = vmatpush2.msra.mxu0 0.0
  %824 = vmatprep.mubr.f32.mxu0 0.0
  %825 = vmatmul.mubr.f32.gmra.mxu0 %v755
  %v826 = vpop.f32.mrf.mxu0
  %v827 = vadd.f32 0.0, %v826
  %v828 = vpop.f32.mrf.mxu0
  %829 = vmatprep.mubr.f32.mxu0 0.0
  %830 = vmatmul.mubr.f32.gmra.mxu0 %v758
  %v831 = vpop.f32.mrf.mxu0
  %v832 = vadd.f32 0.0, %v831
  %v833 = vpop.f32.mrf.mxu0
  %834 = vdwg.mxu0
  %s835 = scalar_lea.vmem %s7, 2
  %v836 = vld [vmem:[%s835] sm:$0x3]
  %v838 = vsel %vm68, %v836, 0
  %v841 = vsel %vm68, %v827, 0
  %v844 = vsel %vm68, %v832, 0
  %846 = vmatprep.subr.mxu0 0.0
  %847 = vmatpush1.xpose.msra.mxu0 0.0
  %848 = vmatprep.subr.mxu0 0.0
  %849 = vmatpush1.xpose.msra.mxu0 0.0
  %850 = vmatprep.subr.mxu0 0.0
  %851 = vmatpush1.xpose.msra.mxu0 0.0
  %852 = vmatprep.subr.mxu0 0.0
  %853 = vmatpush1.xpose.msra.mxu0 0.0
  %854 = vmatprep.subr.mxu0 0.0
  %855 = vmatpush1.xpose.msra.mxu0 0.0
  %856 = vmatprep.subr.mxu0 0.0
  %857 = vmatpush1.xpose.msra.mxu0 0.0
  %858 = vmatprep.subr.mxu0 0.0
  %859 = vmatpush1.xpose.msra.mxu0 0.0
  %860 = vmatprep.subr.mxu0 0.0
  %861 = vmatpush1.xpose.msra.mxu0 0.0
  %862 = vmatprep.subr.mxu0 0.0
  %863 = vmatpush1.xpose.msra.mxu0 0.0
  %864 = vmatprep.subr.mxu0 0.0
  %865 = vmatpush1.xpose.msra.mxu0 0.0
  %866 = vmatprep.subr.mxu0 0.0
  %867 = vmatpush1.xpose.msra.mxu0 0.0
  %868 = vmatprep.subr.mxu0 0.0
  %869 = vmatpush1.xpose.msra.mxu0 0.0
  %870 = vmatprep.subr.mxu0 0.0
  %871 = vmatpush1.xpose.msra.mxu0 0.0
  %872 = vmatprep.subr.mxu0 0.0
  %873 = vmatpush1.xpose.msra.mxu0 0.0
  %874 = vmatprep.subr.mxu0 0.0
  %875 = vmatpush1.xpose.msra.mxu0 %v844
  %876 = vmatprep.subr.mxu0 0.0
  %877 = vmatpush1.xpose.msra.mxu0 %v841
  %878 = vmatprep.subr.mxu0 0.0
  %879 = vmatpush2.xpose.msra.mxu0 0.0
  %880 = vmatprep.subr.mxu0 0.0
  %881 = vmatpush2.xpose.msra.mxu0 0.0
  %882 = vmatprep.subr.mxu0 0.0
  %883 = vmatpush2.xpose.msra.mxu0 0.0
  %884 = vmatprep.subr.mxu0 0.0
  %885 = vmatpush2.xpose.msra.mxu0 0.0
  %886 = vmatprep.subr.mxu0 0.0
  %887 = vmatpush2.xpose.msra.mxu0 0.0
  %888 = vmatprep.subr.mxu0 0.0
  %889 = vmatpush2.xpose.msra.mxu0 0.0
  %890 = vmatprep.subr.mxu0 0.0
  %891 = vmatpush2.xpose.msra.mxu0 0.0
  %892 = vmatprep.subr.mxu0 0.0
  %893 = vmatpush2.xpose.msra.mxu0 0.0
  %894 = vmatprep.subr.mxu0 0.0
  %895 = vmatpush2.xpose.msra.mxu0 0.0
  %896 = vmatprep.subr.mxu0 0.0
  %897 = vmatpush2.xpose.msra.mxu0 0.0
  %898 = vmatprep.subr.mxu0 0.0
  %899 = vmatpush2.xpose.msra.mxu0 0.0
  %900 = vmatprep.subr.mxu0 0.0
  %901 = vmatpush2.xpose.msra.mxu0 0.0
  %902 = vmatprep.subr.mxu0 0.0
  %903 = vmatpush2.xpose.msra.mxu0 0.0
  %904 = vmatprep.subr.mxu0 0.0
  %905 = vmatpush2.xpose.msra.mxu0 0.0
  %906 = vmatprep.subr.mxu0 0.0
  %907 = vmatpush2.xpose.msra.mxu0 0.0
  %908 = vmatprep.subr.mxu0 0.0
  %909 = vmatpush2.xpose.msra.mxu0 0.0
  %910 = vmatprep.mubr.f32.mxu0 0.0
  %911 = vmatmul.mubr.f32.gmra.mxu0 %v838
  %v912 = vpop.f32.mrf.mxu0
  %v913 = vadd.f32 0.0, %v912
  %v914 = vpop.f32.mrf.mxu0
  %915 = vdwg.mxu0
  %s916 = scalar_lea.vmem %s8, 2
  %v917 = vld [vmem:[%s916] sm:$0x3]
  %918 = vrot.lane.b32.xlu0 %v827, 112
  %v919 = vpop.permute.xlu0 %918
  %920 = vrot.lane.b32.xlu0 %v832, 112
  %v921 = vpop.permute.xlu0 %920
  %v923 = vsel %vm68, %v917, 0
  %v925 = vsel %vm68, %v919, 0
  %v927 = vsel %vm68, %v921, 0
  %929 = vmatprep.subr.mxu0 0.0
  %930 = vmatpush1.xpose.msra.mxu0 0.0
  %931 = vmatprep.subr.mxu0 0.0
  %932 = vmatpush1.xpose.msra.mxu0 0.0
  %933 = vmatprep.subr.mxu0 0.0
  %934 = vmatpush1.xpose.msra.mxu0 0.0
  %935 = vmatprep.subr.mxu0 0.0
  %936 = vmatpush1.xpose.msra.mxu0 0.0
  %937 = vmatprep.subr.mxu0 0.0
  %938 = vmatpush1.xpose.msra.mxu0 0.0
  %939 = vmatprep.subr.mxu0 0.0
  %940 = vmatpush1.xpose.msra.mxu0 0.0
  %941 = vmatprep.subr.mxu0 0.0
  %942 = vmatpush1.xpose.msra.mxu0 0.0
  %943 = vmatprep.subr.mxu0 0.0
  %944 = vmatpush1.xpose.msra.mxu0 0.0
  %945 = vmatprep.subr.mxu0 0.0
  %946 = vmatpush1.xpose.msra.mxu0 0.0
  %947 = vmatprep.subr.mxu0 0.0
  %948 = vmatpush1.xpose.msra.mxu0 0.0
  %949 = vmatprep.subr.mxu0 0.0
  %950 = vmatpush1.xpose.msra.mxu0 0.0
  %951 = vmatprep.subr.mxu0 0.0
  %952 = vmatpush1.xpose.msra.mxu0 0.0
  %953 = vmatprep.subr.mxu0 0.0
  %954 = vmatpush1.xpose.msra.mxu0 0.0
  %955 = vmatprep.subr.mxu0 0.0
  %956 = vmatpush1.xpose.msra.mxu0 0.0
  %957 = vmatprep.subr.mxu0 0.0
  %958 = vmatpush1.xpose.msra.mxu0 %v927
  %959 = vmatprep.subr.mxu0 0.0
  %960 = vmatpush1.xpose.msra.mxu0 %v925
  %961 = vmatprep.subr.mxu0 0.0
  %962 = vmatpush2.xpose.msra.mxu0 0.0
  %963 = vmatprep.subr.mxu0 0.0
  %964 = vmatpush2.xpose.msra.mxu0 0.0
  %965 = vmatprep.subr.mxu0 0.0
  %966 = vmatpush2.xpose.msra.mxu0 0.0
  %967 = vmatprep.subr.mxu0 0.0
  %968 = vmatpush2.xpose.msra.mxu0 0.0
  %969 = vmatprep.subr.mxu0 0.0
  %970 = vmatpush2.xpose.msra.mxu0 0.0
  %971 = vmatprep.subr.mxu0 0.0
  %972 = vmatpush2.xpose.msra.mxu0 0.0
  %973 = vmatprep.subr.mxu0 0.0
  %974 = vmatpush2.xpose.msra.mxu0 0.0
  %975 = vmatprep.subr.mxu0 0.0
  %976 = vmatpush2.xpose.msra.mxu0 0.0
  %977 = vmatprep.subr.mxu0 0.0
  %978 = vmatpush2.xpose.msra.mxu0 0.0
  %979 = vmatprep.subr.mxu0 0.0
  %980 = vmatpush2.xpose.msra.mxu0 0.0
  %981 = vmatprep.subr.mxu0 0.0
  %982 = vmatpush2.xpose.msra.mxu0 0.0
  %983 = vmatprep.subr.mxu0 0.0
  %984 = vmatpush2.xpose.msra.mxu0 0.0
  %985 = vmatprep.subr.mxu0 0.0
  %986 = vmatpush2.xpose.msra.mxu0 0.0
  %987 = vmatprep.subr.mxu0 0.0
  %988 = vmatpush2.xpose.msra.mxu0 0.0
  %989 = vmatprep.subr.mxu0 0.0
  %990 = vmatpush2.xpose.msra.mxu0 0.0
  %991 = vmatprep.subr.mxu0 0.0
  %992 = vmatpush2.xpose.msra.mxu0 0.0
  %993 = vmatprep.mubr.f32.mxu0 0.0
  %994 = vmatmul.mubr.f32.gmra.mxu0 %v923
  %v995 = vpop.f32.mrf.mxu0
  %v996 = vadd.f32 0.0, %v995
  %v997 = vpop.f32.mrf.mxu0
  %998 = vdwg.mxu0
  %v999 = vlaneseq
  %v1000 = vshrl.u32 %v999, 7
  %v1001 = vsub.s32 0, %v1000
  %v1002 = vrot.slane %v996, %v1001
  %1004 = vbcast.lane.b32.xlu0 %v1002, 256
  %v1005 = vpop.permute.xlu0 %1004
  %s1007 = sor.u32 256, 8
  %1008 = vbcast.lane.b32.xlu0 %v1002, %s1007
  %v1009 = vpop.permute.xlu0 %1008
  %v1010 = vlaneseq
  %v1011 = vshrl.u32 %v1010, 7
  %v1012 = vsub.s32 1, %v1011
  %v1013 = vrot.slane %v996, %v1012
  %1015 = vbcast.lane.b32.xlu0 %v1013, 256
  %v1016 = vpop.permute.xlu0 %1015
  %s1018 = sor.u32 256, 8
  %1019 = vbcast.lane.b32.xlu0 %v1013, %s1018
  %v1020 = vpop.permute.xlu0 %1019
  %v1023 = vunpack.c.l.s4 1966171168
  %v1024 = vunpack.c.0.s8 %v1023
  %v1025 = vlaneseq
  %v1026 = vshrl.u32 %v1025, 7
  %v1027 = vsub.s32 %v1024, %v1026
  %v1028 = vrot.slane %v913, %v1027
  %v1029 = vcombine.high %v1028, %v1028
  %v1031 = vunpack.c.l.s4 1966171168
  %v1032 = vunpack.c.0.s8 %v1031
  %v1033 = vlaneseq
  %v1034 = vshrl.u32 %v1033, 7
  %v1035 = vsub.s32 %v1032, %v1034
  %v1036 = vrot.slane %v1028, %v1035
  %v1038 = vunpack.c.l.s4 1966171168
  %v1039 = vunpack.c.0.s8 %v1038
  %v1040 = vlaneseq
  %v1041 = vshrl.u32 %v1040, 7
  %v1042 = vsub.s32 %v1039, %v1041
  %v1043 = vrot.slane %v1029, %v1042
  %v1044 = vlaneseq
  %v1045 = vshrl.u32 %v1044, 7
  %v1046 = vsub.s32 0, %v1045
  %v1047 = vrot.slane %v1036, %v1046
  %v1048 = vlaneseq
  %v1049 = vshrl.u32 %v1048, 7
  %v1050 = vsub.s32 0, %v1049
  %v1051 = vrot.slane %v1043, %v1050
  %v1054 = vadd.f32 %v1005, %v1047
  %v1055 = vadd.f32 %v1009, %v1047
  %v1056 = vadd.f32 %v1016, %v1051
  %v1057 = vadd.f32 %v1020, %v1051
  %v1058 = vmul.f32 %v1054, 0.2
  %v1059 = vmul.f32 %v1055, 0.2
  %v1060 = vmul.f32 %v1056, 0.2
  %v1061 = vmul.f32 %v1057, 0.2
  %v1062 = vmax.f32 %v1054, %v1058
  %v1063 = vmax.f32 %v1055, %v1059
  %v1064 = vmax.f32 %v1056, %v1060
  %v1065 = vmax.f32 %v1057, %v1061
  %v1066 = vadd.f32 %v1062, %v54
  %v1067 = vadd.f32 %v1063, %v55
  %v1068 = vadd.f32 %v1064, %v54
  %v1069 = vadd.f32 %v1065, %v55
  %v1070 = vsel %vm68, %v1066, -inf
  %1071 = vmax.xlane.f32.xlu0 %v1070
  %v1072 = vpop.xlane.xlu0 %1071
  %v1073 = vsel %vm68, %v1067, -inf
  %1074 = vmax.xlane.f32.xlu0 %v1073
  %v1075 = vpop.xlane.xlu0 %1074
  %v1076 = vsel %vm68, %v1068, -inf
  %1077 = vmax.xlane.f32.xlu0 %v1076
  %v1078 = vpop.xlane.xlu0 %1077
  %v1079 = vsel %vm68, %v1069, -inf
  %1080 = vmax.xlane.f32.xlu0 %v1079
  %v1081 = vpop.xlane.xlu0 %1080
  %v1082 = vsub.f32 %v1066, %v1072
  %v1083 = vsub.f32 %v1067, %v1075
  %v1084 = vsub.f32 %v1068, %v1078
  %v1085 = vsub.f32 %v1069, %v1081
  %v1086 = vmul.f32 %v1082, 1.442695
  %v1087 = vpow.pop %v1086
  %v1088 = vmul.f32 %v1083, 1.442695
  %v1089 = vpow.pop %v1088
  %v1090 = vmul.f32 %v1084, 1.442695
  %v1091 = vpow.pop %v1090
  %v1092 = vmul.f32 %v1085, 1.442695
  %v1093 = vpow.pop %v1092
  %v1094 = vsel %vm68, %v1087, 0.0
  %1095 = vadd.xlane.f32.xlu0 %v1094
  %v1096 = vpop.xlane.xlu0 %1095
  %v1097 = vsel %vm68, %v1089, 0.0
  %1098 = vadd.xlane.f32.xlu0 %v1097
  %v1099 = vpop.xlane.xlu0 %1098
  %v1100 = vsel %vm68, %v1091, 0.0
  %1101 = vadd.xlane.f32.xlu0 %v1100
  %v1102 = vpop.xlane.xlu0 %1101
  %v1103 = vsel %vm68, %v1093, 0.0
  %1104 = vadd.xlane.f32.xlu0 %v1103
  %v1105 = vpop.xlane.xlu0 %1104
  %v1106 = vrcp.pop %v1096
  %v1107 = vrcp.pop %v1099
  %v1108 = vrcp.pop %v1102
  %v1109 = vrcp.pop %v1105
  %v1110 = vmul.f32 %v1087, %v1106
  %v1111 = vmul.f32 %v1089, %v1107
  %v1112 = vmul.f32 %v1091, %v1108
  %v1113 = vmul.f32 %v1093, %v1109
  %v1115 = vsel %vm68, %v1110, 0
  %v1118 = vsel %vm68, %v1111, 0
  %1120 = vmatprep.subr.mxu0 0.0
  %1121 = vmatpush1.msra.mxu0 0.0
  %1122 = vmatprep.subr.mxu0 0.0
  %1123 = vmatpush1.msra.mxu0 0.0
  %1124 = vmatprep.subr.mxu0 0.0
  %1125 = vmatpush1.msra.mxu0 0.0
  %1126 = vmatprep.subr.mxu0 0.0
  %1127 = vmatpush1.msra.mxu0 0.0
  %1128 = vmatprep.subr.mxu0 0.0
  %1129 = vmatpush1.msra.mxu0 0.0
  %1130 = vmatprep.subr.mxu0 0.0
  %1131 = vmatpush1.msra.mxu0 0.0
  %1132 = vmatprep.subr.mxu0 0.0
  %1133 = vmatpush1.msra.mxu0 0.0
  %1134 = vmatprep.subr.mxu0 0.0
  %1135 = vmatpush1.msra.mxu0 0.0
  %1136 = vmatprep.subr.mxu0 0.0
  %1137 = vmatpush1.msra.mxu0 0.0
  %1138 = vmatprep.subr.mxu0 0.0
  %1139 = vmatpush1.msra.mxu0 0.0
  %1140 = vmatprep.subr.mxu0 0.0
  %1141 = vmatpush1.msra.mxu0 0.0
  %1142 = vmatprep.subr.mxu0 0.0
  %1143 = vmatpush1.msra.mxu0 0.0
  %1144 = vmatprep.subr.mxu0 0.0
  %1145 = vmatpush1.msra.mxu0 0.0
  %1146 = vmatprep.subr.mxu0 0.0
  %1147 = vmatpush1.msra.mxu0 0.0
  %1148 = vmatprep.subr.mxu0 0.0
  %1149 = vmatpush1.msra.mxu0 %v832
  %1150 = vmatprep.subr.mxu0 0.0
  %1151 = vmatpush1.msra.mxu0 %v827
  %1152 = vmatprep.subr.mxu0 0.0
  %1153 = vmatpush2.msra.mxu0 0.0
  %1154 = vmatprep.subr.mxu0 0.0
  %1155 = vmatpush2.msra.mxu0 0.0
  %1156 = vmatprep.subr.mxu0 0.0
  %1157 = vmatpush2.msra.mxu0 0.0
  %1158 = vmatprep.subr.mxu0 0.0
  %1159 = vmatpush2.msra.mxu0 0.0
  %1160 = vmatprep.subr.mxu0 0.0
  %1161 = vmatpush2.msra.mxu0 0.0
  %1162 = vmatprep.subr.mxu0 0.0
  %1163 = vmatpush2.msra.mxu0 0.0
  %1164 = vmatprep.subr.mxu0 0.0
  %1165 = vmatpush2.msra.mxu0 0.0
  %1166 = vmatprep.subr.mxu0 0.0
  %1167 = vmatpush2.msra.mxu0 0.0
  %1168 = vmatprep.subr.mxu0 0.0
  %1169 = vmatpush2.msra.mxu0 0.0
  %1170 = vmatprep.subr.mxu0 0.0
  %1171 = vmatpush2.msra.mxu0 0.0
  %1172 = vmatprep.subr.mxu0 0.0
  %1173 = vmatpush2.msra.mxu0 0.0
  %1174 = vmatprep.subr.mxu0 0.0
  %1175 = vmatpush2.msra.mxu0 0.0
  %1176 = vmatprep.subr.mxu0 0.0
  %1177 = vmatpush2.msra.mxu0 0.0
  %1178 = vmatprep.subr.mxu0 0.0
  %1179 = vmatpush2.msra.mxu0 0.0
  %1180 = vmatprep.subr.mxu0 0.0
  %1181 = vmatpush2.msra.mxu0 0.0
  %1182 = vmatprep.subr.mxu0 0.0
  %1183 = vmatpush2.msra.mxu0 0.0
  %1184 = vmatprep.mubr.f32.mxu0 0.0
  %1185 = vmatmul.mubr.f32.gmra.mxu0 %v1115
  %v1186 = vpop.f32.mrf.mxu0
  %v1187 = vadd.f32 0.0, %v1186
  %v1188 = vpop.f32.mrf.mxu0
  %1189 = vmatprep.mubr.f32.mxu0 0.0
  %1190 = vmatmul.mubr.f32.gmra.mxu0 %v1118
  %v1191 = vpop.f32.mrf.mxu0
  %v1192 = vadd.f32 0.0, %v1191
  %v1193 = vpop.f32.mrf.mxu0
  %1194 = vdwg.mxu0
  %1195 = vrot.lane.b32.xlu0 %v827, 120
  %v1196 = vpop.permute.xlu0 %1195
  %1197 = vrot.lane.b32.xlu0 %v832, 120
  %v1198 = vpop.permute.xlu0 %1197
  %v1202 = vsel %vm68, %v1112, 0
  %v1205 = vsel %vm68, %v1113, 0
  %1207 = vmatprep.subr.mxu0 0.0
  %1208 = vmatpush1.msra.mxu0 0.0
  %1209 = vmatprep.subr.mxu0 0.0
  %1210 = vmatpush1.msra.mxu0 0.0
  %1211 = vmatprep.subr.mxu0 0.0
  %1212 = vmatpush1.msra.mxu0 0.0
  %1213 = vmatprep.subr.mxu0 0.0
  %1214 = vmatpush1.msra.mxu0 0.0
  %1215 = vmatprep.subr.mxu0 0.0
  %1216 = vmatpush1.msra.mxu0 0.0
  %1217 = vmatprep.subr.mxu0 0.0
  %1218 = vmatpush1.msra.mxu0 0.0
  %1219 = vmatprep.subr.mxu0 0.0
  %1220 = vmatpush1.msra.mxu0 0.0
  %1221 = vmatprep.subr.mxu0 0.0
  %1222 = vmatpush1.msra.mxu0 0.0
  %1223 = vmatprep.subr.mxu0 0.0
  %1224 = vmatpush1.msra.mxu0 0.0
  %1225 = vmatprep.subr.mxu0 0.0
  %1226 = vmatpush1.msra.mxu0 0.0
  %1227 = vmatprep.subr.mxu0 0.0
  %1228 = vmatpush1.msra.mxu0 0.0
  %1229 = vmatprep.subr.mxu0 0.0
  %1230 = vmatpush1.msra.mxu0 0.0
  %1231 = vmatprep.subr.mxu0 0.0
  %1232 = vmatpush1.msra.mxu0 0.0
  %1233 = vmatprep.subr.mxu0 0.0
  %1234 = vmatpush1.msra.mxu0 0.0
  %1235 = vmatprep.subr.mxu0 0.0
  %1236 = vmatpush1.msra.mxu0 %v1198
  %1237 = vmatprep.subr.mxu0 0.0
  %1238 = vmatpush1.msra.mxu0 %v1196
  %1239 = vmatprep.subr.mxu0 0.0
  %1240 = vmatpush2.msra.mxu0 0.0
  %1241 = vmatprep.subr.mxu0 0.0
  %1242 = vmatpush2.msra.mxu0 0.0
  %1243 = vmatprep.subr.mxu0 0.0
  %1244 = vmatpush2.msra.mxu0 0.0
  %1245 = vmatprep.subr.mxu0 0.0
  %1246 = vmatpush2.msra.mxu0 0.0
  %1247 = vmatprep.subr.mxu0 0.0
  %1248 = vmatpush2.msra.mxu0 0.0
  %1249 = vmatprep.subr.mxu0 0.0
  %1250 = vmatpush2.msra.mxu0 0.0
  %1251 = vmatprep.subr.mxu0 0.0
  %1252 = vmatpush2.msra.mxu0 0.0
  %1253 = vmatprep.subr.mxu0 0.0
  %1254 = vmatpush2.msra.mxu0 0.0
  %1255 = vmatprep.subr.mxu0 0.0
  %1256 = vmatpush2.msra.mxu0 0.0
  %1257 = vmatprep.subr.mxu0 0.0
  %1258 = vmatpush2.msra.mxu0 0.0
  %1259 = vmatprep.subr.mxu0 0.0
  %1260 = vmatpush2.msra.mxu0 0.0
  %1261 = vmatprep.subr.mxu0 0.0
  %1262 = vmatpush2.msra.mxu0 0.0
  %1263 = vmatprep.subr.mxu0 0.0
  %1264 = vmatpush2.msra.mxu0 0.0
  %1265 = vmatprep.subr.mxu0 0.0
  %1266 = vmatpush2.msra.mxu0 0.0
  %1267 = vmatprep.subr.mxu0 0.0
  %1268 = vmatpush2.msra.mxu0 0.0
  %1269 = vmatprep.subr.mxu0 0.0
  %1270 = vmatpush2.msra.mxu0 0.0
  %1271 = vmatprep.mubr.f32.mxu0 0.0
  %1272 = vmatmul.mubr.f32.gmra.mxu0 %v1202
  %v1273 = vpop.f32.mrf.mxu0
  %v1274 = vadd.f32 0.0, %v1273
  %v1275 = vpop.f32.mrf.mxu0
  %1276 = vmatprep.mubr.f32.mxu0 0.0
  %1277 = vmatmul.mubr.f32.gmra.mxu0 %v1205
  %v1278 = vpop.f32.mrf.mxu0
  %v1279 = vadd.f32 0.0, %v1278
  %v1280 = vpop.f32.mrf.mxu0
  %1281 = vdwg.mxu0
  %1284 = vrot.lane.b32.xlu0 %v1274, 8
  %v1285 = vpop.permute.xlu0 %1284
  %1286 = vrot.lane.b32.xlu0 %v1279, 8
  %v1287 = vpop.permute.xlu0 %1286
  %v1290 = vsel %vm689, %v1187, %v1285
  %v1291 = vsel %vm689, %v1192, %v1287
  %v1292 = vlaneseq
  %v1293 = vshrl.u32 %v1292, 7
  %v1294 = vsub.s32 0, %v1293
  %v1295 = vrot.slane %v750, %v1294
  %v1296 = vadd.f32 %v1290, %v1295
  %v1297 = vadd.f32 %v1291, %v1295
  %v1298 = vsel %vm68, %v1296, 0.0
  %1299 = vadd.xlane.f32.xlu0 %v1298
  %v1300 = vpop.xlane.xlu0 %1299
  %v1301 = vsel %vm68, %v1297, 0.0
  %1302 = vadd.xlane.f32.xlu0 %v1301
  %v1303 = vpop.xlane.xlu0 %1302
  %v1304 = vmul.f32 %v1300, %v704
  %v1305 = vmul.f32 %v1303, %v704
  %v1306 = vsub.f32 %v1296, %v1304
  %v1307 = vsub.f32 %v1297, %v1305
  %v1308 = vmul.f32 %v1306, %v1306
  %v1309 = vmul.f32 %v1307, %v1307
  %v1310 = vsel %vm68, %v1308, 0.0
  %1311 = vadd.xlane.f32.xlu0 %v1310
  %v1312 = vpop.xlane.xlu0 %1311
  %v1313 = vsel %vm68, %v1309, 0.0
  %1314 = vadd.xlane.f32.xlu0 %v1313
  %v1315 = vpop.xlane.xlu0 %1314
  %v1316 = vmul.f32 %v1312, %v704
  %v1317 = vmul.f32 %v1315, %v704
  %v1318 = vadd.f32 %v1316, 1e-05
  %v1319 = vadd.f32 %v1317, 1e-05
  %v1320 = vrsqrt.pop %v1318
  %v1321 = vrsqrt.pop %v1319
  %v1322 = vmul.f32 %v1306, %v1320
  %v1323 = vmul.f32 %v1307, %v1321
  %v1324 = vlaneseq
  %v1325 = vshrl.u32 %v1324, 7
  %v1326 = vsub.s32 1, %v1325
  %v1327 = vrot.slane %v750, %v1326
  %v1328 = vmul.f32 %v1322, %v1327
  %v1329 = vmul.f32 %v1323, %v1327
  %v1330 = vlaneseq
  %v1331 = vshrl.u32 %v1330, 7
  %v1332 = vsub.s32 2, %v1331
  %v1333 = vrot.slane %v750, %v1332
  %v1334 = vadd.f32 %v1328, %v1333
  %v1335 = vadd.f32 %v1329, %v1333
  %vm1336 = vcmp.gt.f32.partialorder %v1334, 0.0
  %vm1337 = vcmp.gt.f32.partialorder %v1335, 0.0
  %v1338 = vlaneseq
  %v1339 = vshrl.u32 %v1338, 7
  %v1340 = vsub.s32 3, %v1339
  %v1341 = vrot.slane %v750, %v1340
  %v1342 = vmul.f32 %v1341, %v1334
  %v1343 = vmul.f32 %v1341, %v1335
  %v1344 = vsel %vm1336, %v1334, %v1342
  %v1345 = vsel %vm1337, %v1335, %v1343
  %1348 = vrot.lane.b32.xlu0 %v745, 16
  %v1349 = vpop.permute.xlu0 %1348
  %1350 = vrot.lane.b32.xlu0 %v746, 16
  %v1351 = vpop.permute.xlu0 %1350
  %1356 = vrot.lane.b32.xlu0 %v1344, 32
  %v1357 = vpop.permute.xlu0 %1356
  %1358 = vrot.lane.b32.xlu0 %v1345, 32
  %v1359 = vpop.permute.xlu0 %1358
  %v1362 = vsel %vm68, %v150, %v1349
  %v1363 = vsel %vm68, %v151, %v1351
  %vm1364 = vcmask 261120
  %v1365 = vsel %vm1364, %v1362, %v1357
  %v1366 = vsel %vm1364, %v1363, %v1359
  %v1368 = vsel %vm68, %v56, 0
  %1370 = vmatprep.subr.mxu0 0.0
  %1371 = vmatpush1.msra.mxu0 0.0
  %1372 = vmatprep.subr.mxu0 0.0
  %1373 = vmatpush1.msra.mxu0 0.0
  %1374 = vmatprep.subr.mxu0 0.0
  %1375 = vmatpush1.msra.mxu0 0.0
  %1376 = vmatprep.subr.mxu0 0.0
  %1377 = vmatpush1.msra.mxu0 0.0
  %1378 = vmatprep.subr.mxu0 0.0
  %1379 = vmatpush1.msra.mxu0 0.0
  %1380 = vmatprep.subr.mxu0 0.0
  %1381 = vmatpush1.msra.mxu0 0.0
  %1382 = vmatprep.subr.mxu0 0.0
  %1383 = vmatpush1.msra.mxu0 0.0
  %1384 = vmatprep.subr.mxu0 0.0
  %1385 = vmatpush1.msra.mxu0 0.0
  %1386 = vmatprep.subr.mxu0 0.0
  %1387 = vmatpush1.msra.mxu0 0.0
  %1388 = vmatprep.subr.mxu0 0.0
  %1389 = vmatpush1.msra.mxu0 0.0
  %1390 = vmatprep.subr.mxu0 0.0
  %1391 = vmatpush1.msra.mxu0 0.0
  %1392 = vmatprep.subr.mxu0 0.0
  %1393 = vmatpush1.msra.mxu0 0.0
  %1394 = vmatprep.subr.mxu0 0.0
  %1395 = vmatpush1.msra.mxu0 0.0
  %1396 = vmatprep.subr.mxu0 0.0
  %1397 = vmatpush1.msra.mxu0 0.0
  %1398 = vmatprep.subr.mxu0 0.0
  %1399 = vmatpush1.msra.mxu0 %v1366
  %1400 = vmatprep.subr.mxu0 0.0
  %1401 = vmatpush1.msra.mxu0 %v1365
  %1402 = vmatprep.subr.mxu0 0.0
  %1403 = vmatpush2.msra.mxu0 0.0
  %1404 = vmatprep.subr.mxu0 0.0
  %1405 = vmatpush2.msra.mxu0 0.0
  %1406 = vmatprep.subr.mxu0 0.0
  %1407 = vmatpush2.msra.mxu0 0.0
  %1408 = vmatprep.subr.mxu0 0.0
  %1409 = vmatpush2.msra.mxu0 0.0
  %1410 = vmatprep.subr.mxu0 0.0
  %1411 = vmatpush2.msra.mxu0 0.0
  %1412 = vmatprep.subr.mxu0 0.0
  %1413 = vmatpush2.msra.mxu0 0.0
  %1414 = vmatprep.subr.mxu0 0.0
  %1415 = vmatpush2.msra.mxu0 0.0
  %1416 = vmatprep.subr.mxu0 0.0
  %1417 = vmatpush2.msra.mxu0 0.0
  %1418 = vmatprep.subr.mxu0 0.0
  %1419 = vmatpush2.msra.mxu0 0.0
  %1420 = vmatprep.subr.mxu0 0.0
  %1421 = vmatpush2.msra.mxu0 0.0
  %1422 = vmatprep.subr.mxu0 0.0
  %1423 = vmatpush2.msra.mxu0 0.0
  %1424 = vmatprep.subr.mxu0 0.0
  %1425 = vmatpush2.msra.mxu0 0.0
  %1426 = vmatprep.subr.mxu0 0.0
  %1427 = vmatpush2.msra.mxu0 0.0
  %1428 = vmatprep.subr.mxu0 0.0
  %1429 = vmatpush2.msra.mxu0 0.0
  %1430 = vmatprep.subr.mxu0 0.0
  %1431 = vmatpush2.msra.mxu0 0.0
  %1432 = vmatprep.subr.mxu0 0.0
  %1433 = vmatpush2.msra.mxu0 0.0
  %1434 = vmatprep.mubr.f32.mxu0 0.0
  %1435 = vmatmul.mubr.f32.gmra.mxu0 %v1368
  %v1436 = vpop.f32.mrf.mxu0
  %v1437 = vadd.f32 0.0, %v1436
  %v1438 = vpop.f32.mrf.mxu0
  %1439 = vdwg.mxu0
  %v1440 = vld [vmem:[%s10] sm:$0xff]
  %v1441 = vld [vmem:[%s10 + $0x8] sm:$0xff]
  %v1442 = vld [vmem:[%s10 + $0x10] sm:$0xff]
  %v1443 = vld [vmem:[%s10 + $0x18] sm:$0xff]
  %v1444 = vld [vmem:[%s10 + $0x20] sm:$0xff]
  %v1445 = vld [vmem:[%s10 + $0x28] sm:$0xff]
  %v1446 = vld [vmem:[%s11] sm:$0x1]
  %v1448 = vlaneseq
  %v1449 = vshrl.u32 %v1448, 7
  %v1450 = vsub.s32 0, %v1449
  %v1451 = vrot.slane %v1446, %v1450
  %vm1453 = vcmask 392192
  %v1455 = vsel %vm1453, %v1437, 0
  %1457 = vmatprep.subr.mxu0 0.0
  %1458 = vmatpush1.msra.mxu0 0.0
  %1459 = vmatprep.subr.mxu0 0.0
  %1460 = vmatpush1.msra.mxu0 0.0
  %1461 = vmatprep.subr.mxu0 0.0
  %1462 = vmatpush1.msra.mxu0 0.0
  %1463 = vmatprep.subr.mxu0 0.0
  %1464 = vmatpush1.msra.mxu0 0.0
  %1465 = vmatprep.subr.mxu0 0.0
  %1466 = vmatpush1.msra.mxu0 0.0
  %1467 = vmatprep.subr.mxu0 0.0
  %1468 = vmatpush1.msra.mxu0 0.0
  %1469 = vmatprep.subr.mxu0 0.0
  %1470 = vmatpush1.msra.mxu0 0.0
  %1471 = vmatprep.subr.mxu0 0.0
  %1472 = vmatpush1.msra.mxu0 0.0
  %1473 = vmatprep.subr.mxu0 0.0
  %1474 = vmatpush1.msra.mxu0 0.0
  %1475 = vmatprep.subr.mxu0 0.0
  %1476 = vmatpush1.msra.mxu0 0.0
  %1477 = vmatprep.subr.mxu0 0.0
  %1478 = vmatpush1.msra.mxu0 %v1445
  %1479 = vmatprep.subr.mxu0 0.0
  %1480 = vmatpush1.msra.mxu0 %v1444
  %1481 = vmatprep.subr.mxu0 0.0
  %1482 = vmatpush1.msra.mxu0 %v1443
  %1483 = vmatprep.subr.mxu0 0.0
  %1484 = vmatpush1.msra.mxu0 %v1442
  %1485 = vmatprep.subr.mxu0 0.0
  %1486 = vmatpush1.msra.mxu0 %v1441
  %1487 = vmatprep.subr.mxu0 0.0
  %1488 = vmatpush1.msra.mxu0 %v1440
  %1489 = vmatprep.subr.mxu0 0.0
  %1490 = vmatpush2.msra.mxu0 0.0
  %1491 = vmatprep.subr.mxu0 0.0
  %1492 = vmatpush2.msra.mxu0 0.0
  %1493 = vmatprep.subr.mxu0 0.0
  %1494 = vmatpush2.msra.mxu0 0.0
  %1495 = vmatprep.subr.mxu0 0.0
  %1496 = vmatpush2.msra.mxu0 0.0
  %1497 = vmatprep.subr.mxu0 0.0
  %1498 = vmatpush2.msra.mxu0 0.0
  %1499 = vmatprep.subr.mxu0 0.0
  %1500 = vmatpush2.msra.mxu0 0.0
  %1501 = vmatprep.subr.mxu0 0.0
  %1502 = vmatpush2.msra.mxu0 0.0
  %1503 = vmatprep.subr.mxu0 0.0
  %1504 = vmatpush2.msra.mxu0 0.0
  %1505 = vmatprep.subr.mxu0 0.0
  %1506 = vmatpush2.msra.mxu0 0.0
  %1507 = vmatprep.subr.mxu0 0.0
  %1508 = vmatpush2.msra.mxu0 0.0
  %1509 = vmatprep.subr.mxu0 0.0
  %1510 = vmatpush2.msra.mxu0 0.0
  %1511 = vmatprep.subr.mxu0 0.0
  %1512 = vmatpush2.msra.mxu0 0.0
  %1513 = vmatprep.subr.mxu0 0.0
  %1514 = vmatpush2.msra.mxu0 0.0
  %1515 = vmatprep.subr.mxu0 0.0
  %1516 = vmatpush2.msra.mxu0 0.0
  %1517 = vmatprep.subr.mxu0 0.0
  %1518 = vmatpush2.msra.mxu0 0.0
  %1519 = vmatprep.subr.mxu0 0.0
  %1520 = vmatpush2.msra.mxu0 0.0
  %1521 = vmatprep.mubr.f32.mxu0 0.0
  %1522 = vmatmul.mubr.f32.gmra.mxu0 %v1455
  %v1523 = vpop.f32.mrf.mxu0
  %v1524 = vadd.f32 %v1451, %v1523
  %v1525 = vpop.f32.mrf.mxu0
  %1526 = vdwg.mxu0
  %v1527 = vmax.f32 %v1524, 0.0
  %v1528 = vld [vmem:[%s12] sm:$0xff]
  %v1529 = vld [vmem:[%s12 + $0x8] sm:$0xff]
  %v1530 = vld [vmem:[%s13] sm:$0x1]
  %v1532 = vlaneseq
  %v1533 = vshrl.u32 %v1532, 7
  %v1534 = vsub.s32 0, %v1533
  %v1535 = vrot.slane %v1530, %v1534
  %v1538 = vsel %vm68, %v1527, 0
  %1540 = vmatprep.subr.mxu0 0.0
  %1541 = vmatpush1.msra.mxu0 0.0
  %1542 = vmatprep.subr.mxu0 0.0
  %1543 = vmatpush1.msra.mxu0 0.0
  %1544 = vmatprep.subr.mxu0 0.0
  %1545 = vmatpush1.msra.mxu0 0.0
  %1546 = vmatprep.subr.mxu0 0.0
  %1547 = vmatpush1.msra.mxu0 0.0
  %1548 = vmatprep.subr.mxu0 0.0
  %1549 = vmatpush1.msra.mxu0 0.0
  %1550 = vmatprep.subr.mxu0 0.0
  %1551 = vmatpush1.msra.mxu0 0.0
  %1552 = vmatprep.subr.mxu0 0.0
  %1553 = vmatpush1.msra.mxu0 0.0
  %1554 = vmatprep.subr.mxu0 0.0
  %1555 = vmatpush1.msra.mxu0 0.0
  %1556 = vmatprep.subr.mxu0 0.0
  %1557 = vmatpush1.msra.mxu0 0.0
  %1558 = vmatprep.subr.mxu0 0.0
  %1559 = vmatpush1.msra.mxu0 0.0
  %1560 = vmatprep.subr.mxu0 0.0
  %1561 = vmatpush1.msra.mxu0 0.0
  %1562 = vmatprep.subr.mxu0 0.0
  %1563 = vmatpush1.msra.mxu0 0.0
  %1564 = vmatprep.subr.mxu0 0.0
  %1565 = vmatpush1.msra.mxu0 0.0
  %1566 = vmatprep.subr.mxu0 0.0
  %1567 = vmatpush1.msra.mxu0 0.0
  %1568 = vmatprep.subr.mxu0 0.0
  %1569 = vmatpush1.msra.mxu0 %v1529
  %1570 = vmatprep.subr.mxu0 0.0
  %1571 = vmatpush1.msra.mxu0 %v1528
  %1572 = vmatprep.subr.mxu0 0.0
  %1573 = vmatpush2.msra.mxu0 0.0
  %1574 = vmatprep.subr.mxu0 0.0
  %1575 = vmatpush2.msra.mxu0 0.0
  %1576 = vmatprep.subr.mxu0 0.0
  %1577 = vmatpush2.msra.mxu0 0.0
  %1578 = vmatprep.subr.mxu0 0.0
  %1579 = vmatpush2.msra.mxu0 0.0
  %1580 = vmatprep.subr.mxu0 0.0
  %1581 = vmatpush2.msra.mxu0 0.0
  %1582 = vmatprep.subr.mxu0 0.0
  %1583 = vmatpush2.msra.mxu0 0.0
  %1584 = vmatprep.subr.mxu0 0.0
  %1585 = vmatpush2.msra.mxu0 0.0
  %1586 = vmatprep.subr.mxu0 0.0
  %1587 = vmatpush2.msra.mxu0 0.0
  %1588 = vmatprep.subr.mxu0 0.0
  %1589 = vmatpush2.msra.mxu0 0.0
  %1590 = vmatprep.subr.mxu0 0.0
  %1591 = vmatpush2.msra.mxu0 0.0
  %1592 = vmatprep.subr.mxu0 0.0
  %1593 = vmatpush2.msra.mxu0 0.0
  %1594 = vmatprep.subr.mxu0 0.0
  %1595 = vmatpush2.msra.mxu0 0.0
  %1596 = vmatprep.subr.mxu0 0.0
  %1597 = vmatpush2.msra.mxu0 0.0
  %1598 = vmatprep.subr.mxu0 0.0
  %1599 = vmatpush2.msra.mxu0 0.0
  %1600 = vmatprep.subr.mxu0 0.0
  %1601 = vmatpush2.msra.mxu0 0.0
  %1602 = vmatprep.subr.mxu0 0.0
  %1603 = vmatpush2.msra.mxu0 0.0
  %1604 = vmatprep.mubr.f32.mxu0 0.0
  %1605 = vmatmul.mubr.f32.gmra.mxu0 %v1538
  %v1606 = vpop.f32.mrf.mxu0
  %v1607 = vadd.f32 %v1535, %v1606
  %v1608 = vpop.f32.mrf.mxu0
  %1609 = vdwg.mxu0
  %v1610 = vmax.f32 %v1607, 0.0
  %v1611 = vld [vmem:[%s3] sm:$0x3]
  %1613 = vrot.lane.b32.xlu0 %v1610, 2
  %v1614 = vpop.permute.xlu0 %1613
  %vm1616 = vcmask 15360
  %v1617 = vsel %vm1616, %v1611, %v1614
  %v1618 = vld [vmem:[%s14] sm:$0xff]
  %v1619 = vld [vmem:[%s14 + $0x8] sm:$0xff]
  %v1620 = vld [vmem:[%s14 + $0x10] sm:$0x3]
  %vm1621 = vcmask 146432
  %v1623 = vsel %vm1621, %v1617, 0
  %vm1625 = vcmask 1041408
  %v1627 = vsel %vm1625, %v1620, 0
  %1629 = vmatprep.subr.mxu0 0.0
  %1630 = vmatpush1.msra.mxu0 0.0
  %1631 = vmatprep.subr.mxu0 0.0
  %1632 = vmatpush1.msra.mxu0 0.0
  %1633 = vmatprep.subr.mxu0 0.0
  %1634 = vmatpush1.msra.mxu0 0.0
  %1635 = vmatprep.subr.mxu0 0.0
  %1636 = vmatpush1.msra.mxu0 0.0
  %1637 = vmatprep.subr.mxu0 0.0
  %1638 = vmatpush1.msra.mxu0 0.0
  %1639 = vmatprep.subr.mxu0 0.0
  %1640 = vmatpush1.msra.mxu0 0.0
  %1641 = vmatprep.subr.mxu0 0.0
  %1642 = vmatpush1.msra.mxu0 0.0
  %1643 = vmatprep.subr.mxu0 0.0
  %1644 = vmatpush1.msra.mxu0 0.0
  %1645 = vmatprep.subr.mxu0 0.0
  %1646 = vmatpush1.msra.mxu0 0.0
  %1647 = vmatprep.subr.mxu0 0.0
  %1648 = vmatpush1.msra.mxu0 0.0
  %1649 = vmatprep.subr.mxu0 0.0
  %1650 = vmatpush1.msra.mxu0 0.0
  %1651 = vmatprep.subr.mxu0 0.0
  %1652 = vmatpush1.msra.mxu0 0.0
  %1653 = vmatprep.subr.mxu0 0.0
  %1654 = vmatpush1.msra.mxu0 0.0
  %1655 = vmatprep.subr.mxu0 0.0
  %1656 = vmatpush1.msra.mxu0 %v1627
  %1657 = vmatprep.subr.mxu0 0.0
  %1658 = vmatpush1.msra.mxu0 %v1619
  %1659 = vmatprep.subr.mxu0 0.0
  %1660 = vmatpush1.msra.mxu0 %v1618
  %1661 = vmatprep.subr.mxu0 0.0
  %1662 = vmatpush2.msra.mxu0 0.0
  %1663 = vmatprep.subr.mxu0 0.0
  %1664 = vmatpush2.msra.mxu0 0.0
  %1665 = vmatprep.subr.mxu0 0.0
  %1666 = vmatpush2.msra.mxu0 0.0
  %1667 = vmatprep.subr.mxu0 0.0
  %1668 = vmatpush2.msra.mxu0 0.0
  %1669 = vmatprep.subr.mxu0 0.0
  %1670 = vmatpush2.msra.mxu0 0.0
  %1671 = vmatprep.subr.mxu0 0.0
  %1672 = vmatpush2.msra.mxu0 0.0
  %1673 = vmatprep.subr.mxu0 0.0
  %1674 = vmatpush2.msra.mxu0 0.0
  %1675 = vmatprep.subr.mxu0 0.0
  %1676 = vmatpush2.msra.mxu0 0.0
  %1677 = vmatprep.subr.mxu0 0.0
  %1678 = vmatpush2.msra.mxu0 0.0
  %1679 = vmatprep.subr.mxu0 0.0
  %1680 = vmatpush2.msra.mxu0 0.0
  %1681 = vmatprep.subr.mxu0 0.0
  %1682 = vmatpush2.msra.mxu0 0.0
  %1683 = vmatprep.subr.mxu0 0.0
  %1684 = vmatpush2.msra.mxu0 0.0
  %1685 = vmatprep.subr.mxu0 0.0
  %1686 = vmatpush2.msra.mxu0 0.0
  %1687 = vmatprep.subr.mxu0 0.0
  %1688 = vmatpush2.msra.mxu0 0.0
  %1689 = vmatprep.subr.mxu0 0.0
  %1690 = vmatpush2.msra.mxu0 0.0
  %1691 = vmatprep.subr.mxu0 0.0
  %1692 = vmatpush2.msra.mxu0 0.0
  %1693 = vmatprep.mubr.f32.mxu0 0.0
  %1694 = vmatmul.mubr.f32.gmra.mxu0 %v1623
  %v1695 = vpop.f32.mrf.mxu0
  %v1696 = vadd.f32 0.0, %v1695
  %v1697 = vpop.f32.mrf.mxu0
  %1698 = vdwg.mxu0
  %vm1699 = vcmask 1024
  %1700 = vst.msk [vmem:[%s15] sm:$0x3] %vm1699, %v1696
  // Predicated region
  $region62: #{forward.1} parent=0 // pred_check
    _
  $region63: #{forward.1} parent=0 // pred_check_branch
    %1702 = sbr.rel (0) target = $region65
  $region64: #{forward.1} parent=0 // pred_region
    _
  $region65: #{forward.1} parent=0 // pred_fallthru
    _
  // Predicated region
  $region66: #{forward.1} parent=0 // pred_check
    _
  $region67: #{forward.1} parent=0 // pred_check_branch
    %1704 = sbr.rel (0) target = $region69
  $region68: #{forward.1} parent=0 // pred_region
    _
  $region69: #{forward.1} parent=0 // pred_fallthru
    _

</llo_original>
